<compile_context>
chip_gen: v7x
topology: tpu7x:2x2x1
jax: 0.10.0
libtpu: 0.0.40
codegen_flags: <defaults>
</compile_context>

<pallas_src>
import jax
import jax.numpy as jnp
import numpy as np
from jax.experimental import pallas as pl
from jax.experimental.pallas import tpu as pltpu


LOOK_BACK = 4      # LSTM input size
HIDE_DIM = 6       # module default hidden size
GATE_PITCH = 32    # per-gate lane slot; 4 gates of one layer = one 128-lane vreg
BATCH_PAD = 8      # batch padded to the 8-sublane tile


def _make_kernel(S, BP, GP):
    NG = 4 * GP  # 128: fused gate width of one layer

    def gate_block(g, c_prev):
        """LSTM nonlinearities on fused (BP, 4*GP) pre-activations, gates (i,f,g,o).

        Padded lanes (>= H inside each GP-lane slot) see zero pre-activations and zero
        c_prev, so returned h/c stay exactly zero there.
        """
        sg = jax.nn.sigmoid(g)          # one full-vreg EUP pass (i, f, o lanes used)
        th = jnp.tanh(g)                # one full-vreg EUP pass (g lanes used)
        i = sg[:, 0 * GP:1 * GP]        # 32-lane slices ride the idle XLU slot
        f = sg[:, 1 * GP:2 * GP]
        gg = th[:, 2 * GP:3 * GP]
        o = sg[:, 3 * GP:4 * GP]
        c_new = f * c_prev + i * gg
        h_new = o * jnp.tanh(c_new)
        return h_new, c_new

    def kernel(x_ref, w0x_ref, b0_ref, wf_ref, b1_ref, wout_ref, bout_ref,
               out_ref, hs_ref):
        # ---- Layer-0 input projection (+ bias) for ALL timesteps: one MXU call. ----
        xg0 = jnp.dot(x_ref[...], w0x_ref[...],
                      preferred_element_type=jnp.float32) + b0_ref[...]   # (S*BP, NG)

        wf = wf_ref[...]                                   # (2*GP, 2*NG) block-diag
        b1 = jnp.broadcast_to(b1_ref[...], (BP, NG))       # hoisted: no per-iter bcast

        zeros = jnp.zeros((BP, GP), jnp.float32)

        # Prologue (wavefront skew): layer-0 step 0; h0_{-1} = 0 so no matmul needed.
        h0, c0 = gate_block(xg0[0:BP, :], zeros)
        h1, c1 = zeros, zeros

        # Wavefront body: layer-0 step s and layer-1 step s-1 from ONE fused matmul.
        # The two gate blocks are mutually independent, so their EUP pushes pipeline.
        for s in range(1, S):
            z = jnp.concatenate([h0, h1], axis=-1)         # (BP, 2*GP) = [h0 | h1_prev]
            g = jnp.dot(z, wf, preferred_element_type=jnp.float32)     # (BP, 2*NG)
            g0 = g[:, 0:NG] + xg0[s * BP:(s + 1) * BP, :]  # tile-aligned slice
            g1 = g[:, NG:2 * NG] + b1
            h0, c0 = gate_block(g0, c0)                    # layer 0, step s
            h1, c1 = gate_block(g1, c1)                    # layer 1, step s-1
            hs_ref[(s - 1) * BP:s * BP, :] = h1            # aligned (8, GP) store

        # Epilogue: layer-1 step S-1 only (layer-1 half of the fused weight).
        z = jnp.concatenate([h0, h1], axis=-1)
        g1 = jnp.dot(z, wf[:, NG:2 * NG],
                     preferred_element_type=jnp.float32) + b1
        h1, _ = gate_block(g1, c1)
        hs_ref[(S - 1) * BP:S * BP, :] = h1

        # ---- Linear(hide_dim, 1) head over all timesteps: VPU mult + lane reduce. ----
        hs = hs_ref[...]                                   # (S*BP, GP)
        y = jnp.sum(hs * wout_ref[...], axis=-1, keepdims=True) + bout_ref[...]
        out_ref[...] = y.astype(out_ref.dtype)             # single (S*BP, 1) store

    return kernel


def rnn_forward(x, packed):
    """x: (S, B, I) float32; returns (S, B, 1), matching RNN.forward."""
    S, B, I = x.shape
    BP, GP = BATCH_PAD, GATE_PITCH
    # Pad batch to the 8-sublane tile so every per-step slice/store is tile-aligned.
    xp = jnp.zeros((S, BP, I), jnp.float32).at[:, :B, :].set(x.astype(jnp.float32))
    x2 = xp.reshape(S * BP, I)

    vmem = pl.BlockSpec(memory_space=pltpu.MemorySpace.VMEM)
    out = pl.pallas_call(
        _make_kernel(S, BP, GP),
        out_shape=jax.ShapeDtypeStruct((S * BP, 1), jnp.float32),
        in_specs=[vmem] * 7,
        out_specs=vmem,
        scratch_shapes=[pltpu.VMEM((S * BP, GP), jnp.float32)],
    )(x2, packed["w0x"], packed["b0"], packed["wf"],
      packed["b1"], packed["wout"], packed["bout"])
    return out.reshape(S, BP, 1)[:, :B, :]


# ---------------------------------------------------------------------------
# Parameter construction (PyTorch layout) and packing into the kernel layout.
# ---------------------------------------------------------------------------
def init_params(key, look_back=LOOK_BACK, hidden=HIDE_DIM):
    """PyTorch-layout LSTM + Linear params, uniform(-1/sqrt(H), 1/sqrt(H))."""
    keys = jax.random.split(key, 10)
    stdv = 1.0 / np.sqrt(hidden)

    def u(k, shape):
        return jax.random.uniform(k, shape, jnp.float32, -stdv, stdv)

    return {
        "w_ih_l0": u(keys[0], (4 * hidden, look_back)),
        "w_hh_l0": u(keys[1], (4 * hidden, hidden)),
        "b_ih_l0": u(keys[2], (4 * hidden,)),
        "b_hh_l0": u(keys[3], (4 * hidden,)),
        "w_ih_l1": u(keys[4], (4 * hidden, hidden)),
        "w_hh_l1": u(keys[5], (4 * hidden, hidden)),
        "b_ih_l1": u(keys[6], (4 * hidden,)),
        "b_hh_l1": u(keys[7], (4 * hidden,)),
        "w_out": u(keys[8], (1, hidden)),
        "b_out": u(keys[9], (1,)),
    }


def pack_params(raw, look_back=LOOK_BACK, hidden=HIDE_DIM, GP=GATE_PITCH):
    """Repack PyTorch-layout weights into the fused wavefront kernel layout."""
    H = hidden
    NG = 4 * GP

    def pack_w(w, in_dim):
        # PyTorch (4H, in_dim) -> (in_dim, 4*GP); gate k lives in lanes [k*GP, k*GP+H).
        w = np.asarray(w, np.float32).reshape(4, H, in_dim)
        out = np.zeros((in_dim, NG), np.float32)
        for k in range(4):
            out[:, k * GP:k * GP + H] = w[k].T
        return out

    def pack_b(b_ih, b_hh):
        b = np.asarray(b_ih, np.float32) + np.asarray(b_hh, np.float32)
        out = np.zeros((1, NG), np.float32)
        for k in range(4):
            out[0, k * GP:k * GP + H] = b[k * H:(k + 1) * H]
        return out

    w0x = pack_w(raw["w_ih_l0"], look_back)            # (I, 128)
    w0h = pack_w(raw["w_hh_l0"], H)                    # (H, 128)
    b0 = pack_b(raw["b_ih_l0"], raw["b_hh_l0"])        # (1, 128)
    w1x = pack_w(raw["w_ih_l1"], H)                    # (H, 128)
    w1h = pack_w(raw["w_hh_l1"], H)                    # (H, 128)
    b1 = pack_b(raw["b_ih_l1"], raw["b_hh_l1"])        # (1, 128)

    # Block-diagonal wavefront RHS: rows [0:GP) are h0 lanes, rows [GP:2*GP) are
    # h1_prev lanes; columns [0:NG) are layer-0 gates, columns [NG:2*NG) layer-1 gates.
    wf = np.zeros((2 * GP, 2 * NG), np.float32)        # (64, 256) ~ 64 KB
    wf[0:H, 0:NG] = w0h                                # h0      -> layer-0 gates
    wf[0:H, NG:2 * NG] = w1x                           # h0      -> layer-1 gates
    wf[GP:GP + H, NG:2 * NG] = w1h                     # h1_prev -> layer-1 gates

    wout = np.zeros((1, GP), np.float32)
    wout[0, :H] = np.asarray(raw["w_out"], np.float32)[0]
    bout = np.asarray(raw["b_out"], np.float32).reshape(1, 1)

    packed = dict(w0x=w0x, b0=b0, wf=wf, b1=b1, wout=wout, bout=bout)
    return {k: jnp.asarray(v) for k, v in packed.items()}


# ---------------------------------------------------------------------------
# Pure-JAX reference (independent of the kernel's packed layout).
# ---------------------------------------------------------------------------
def rnn_reference(x, raw, hidden=HIDE_DIM):
    S, B, _ = x.shape
    H = hidden

    def cell(x_in, h, c, w_ih, w_hh, b_ih, b_hh):
        g = x_in @ w_ih.T + h @ w_hh.T + b_ih + b_hh            # (B, 4H)
        i = jax.nn.sigmoid(g[:, 0:H])
        f = jax.nn.sigmoid(g[:, H:2 * H])
        gg = jnp.tanh(g[:, 2 * H:3 * H])
        o = jax.nn.sigmoid(g[:, 3 * H:4 * H])
        c = f * c + i * gg
        h = o * jnp.tanh(c)
        return h, c

    h0 = jnp.zeros((B, H), jnp.float32)
    c0 = jnp.zeros((B, H), jnp.float32)
    h1 = jnp.zeros((B, H), jnp.float32)
    c1 = jnp.zeros((B, H), jnp.float32)
    outs = []
    for t in range(S):
        h0, c0 = cell(x[t], h0, c0, raw["w_ih_l0"], raw["w_hh_l0"],
                      raw["b_ih_l0"], raw["b_hh_l0"])
        h1, c1 = cell(h0, h1, c1, raw["w_ih_l1"], raw["w_hh_l1"],
                      raw["b_ih_l1"], raw["b_hh_l1"])
        outs.append(h1 @ raw["w_out"].T + raw["b_out"])
    return jnp.stack(outs, axis=0)                              # (S, B, 1)


if __name__ == "__main__":
    SEQ = 8
    BATCH = 2

    key = jax.random.PRNGKey(0)
    kx, kp = jax.random.split(key)
    x = jax.random.normal(kx, (SEQ, BATCH, LOOK_BACK), jnp.float32)
    raw = init_params(kp)
    packed = pack_params(raw)

    out = rnn_forward(x, packed)
    jax.block_until_ready(out)
    assert out.shape == (SEQ, BATCH, 1)

    ref = rnn_reference(x, raw)
    np.testing.assert_allclose(np.asarray(out), np.asarray(ref),
                               rtol=1e-5, atol=1e-5)
    print("KERNEL_OK")
</pallas_src>

<mosaic_0001>
module attributes {stable_mosaic.version = 11 : i64} {
  func.func @kernel(%arg0: memref<64x4xf32, #tpu.memory_space<vmem>>, %arg1: memref<4x128xf32, #tpu.memory_space<vmem>>, %arg2: memref<1x128xf32, #tpu.memory_space<vmem>>, %arg3: memref<64x256xf32, #tpu.memory_space<vmem>>, %arg4: memref<1x128xf32, #tpu.memory_space<vmem>>, %arg5: memref<1x32xf32, #tpu.memory_space<vmem>>, %arg6: memref<1x1xf32, #tpu.memory_space<vmem>>, %arg7: memref<64x1xf32, #tpu.memory_space<vmem>>, %arg8: memref<64x32xf32, #tpu.memory_space<vmem>>) attributes {dimension_semantics = [], scalar_prefetch = 0 : i64, scratch_operands = 1 : i64, tpu.core_type = #tpu.core_type<tc>} {
    %c0 = arith.constant 0 : index
    %c0_0 = arith.constant 0 : index
    %0 = vector.load %arg0[%c0, %c0_0] : memref<64x4xf32, #tpu.memory_space<vmem>>, vector<64x4xf32>
    %c0_1 = arith.constant 0 : index
    %c0_2 = arith.constant 0 : index
    %1 = vector.load %arg1[%c0_1, %c0_2] : memref<4x128xf32, #tpu.memory_space<vmem>>, vector<4x128xf32>
    %cst = arith.constant dense<0.000000e+00> : vector<64x128xf32>
    %2 = tpu.matmul %0, %1, %cst {dimension_numbers = #tpu.dot_dimension_numbers<[1], [0], [0], [1], [0, 0, 1, 1], [], []>} : vector<64x4xf32>, vector<4x128xf32>, vector<64x128xf32> -> vector<64x128xf32>
    %c0_3 = arith.constant 0 : index
    %c0_4 = arith.constant 0 : index
    %3 = vector.load %arg2[%c0_3, %c0_4] : memref<1x128xf32, #tpu.memory_space<vmem>>, vector<1x128xf32>
    %4 = vector.broadcast %3 : vector<1x128xf32> to vector<64x128xf32>
    %5 = arith.addf %2, %4 : vector<64x128xf32>
    %c0_5 = arith.constant 0 : index
    %c0_6 = arith.constant 0 : index
    %6 = vector.load %arg3[%c0_5, %c0_6] : memref<64x256xf32, #tpu.memory_space<vmem>>, vector<64x256xf32>
    %c0_7 = arith.constant 0 : index
    %c0_8 = arith.constant 0 : index
    %7 = vector.load %arg4[%c0_7, %c0_8] : memref<1x128xf32, #tpu.memory_space<vmem>>, vector<1x128xf32>
    %8 = vector.shape_cast %7 : vector<1x128xf32> to vector<1x128xf32>
    %9 = vector.broadcast %8 : vector<1x128xf32> to vector<8x128xf32>
    %cst_9 = arith.constant 0.000000e+00 : f32
    %10 = vector.broadcast %cst_9 : f32 to vector<8x32xf32>
    %11 = vector.extract_strided_slice %5 {offsets = [0, 0], sizes = [8, 128], strides = [1, 1]} : vector<64x128xf32> to vector<8x128xf32>
    %12 = arith.negf %11 : vector<8x128xf32>
    %13 = math.exp %12 : vector<8x128xf32>
    %cst_10 = arith.constant 1.000000e+00 : f32
    %14 = vector.broadcast %cst_10 : f32 to vector<8x128xf32>
    %15 = arith.addf %14, %13 : vector<8x128xf32>
    %16 = arith.divf %14, %15 : vector<8x128xf32>
    %17 = math.tanh %11 : vector<8x128xf32>
    %18 = vector.extract_strided_slice %16 {offsets = [0, 0], sizes = [8, 32], strides = [1, 1]} : vector<8x128xf32> to vector<8x32xf32>
    %19 = vector.extract_strided_slice %16 {offsets = [0, 32], sizes = [8, 32], strides = [1, 1]} : vector<8x128xf32> to vector<8x32xf32>
    %20 = vector.extract_strided_slice %17 {offsets = [0, 64], sizes = [8, 32], strides = [1, 1]} : vector<8x128xf32> to vector<8x32xf32>
    %21 = vector.extract_strided_slice %16 {offsets = [0, 96], sizes = [8, 32], strides = [1, 1]} : vector<8x128xf32> to vector<8x32xf32>
    %22 = arith.mulf %19, %10 : vector<8x32xf32>
    %23 = arith.mulf %18, %20 : vector<8x32xf32>
    %24 = arith.addf %22, %23 : vector<8x32xf32>
    %25 = math.tanh %24 : vector<8x32xf32>
    %26 = arith.mulf %21, %25 : vector<8x32xf32>
    %27 = tpu.concatenate %26, %10 in 1 : vector<8x32xf32>, vector<8x32xf32> -> vector<8x64xf32>
    %cst_11 = arith.constant dense<0.000000e+00> : vector<8x256xf32>
    %28 = tpu.matmul %27, %6, %cst_11 {dimension_numbers = #tpu.dot_dimension_numbers<[1], [0], [0], [1], [0, 0, 1, 1], [], []>} : vector<8x64xf32>, vector<64x256xf32>, vector<8x256xf32> -> vector<8x256xf32>
    %29 = vector.extract_strided_slice %28 {offsets = [0, 0], sizes = [8, 128], strides = [1, 1]} : vector<8x256xf32> to vector<8x128xf32>
    %30 = vector.extract_strided_slice %5 {offsets = [8, 0], sizes = [8, 128], strides = [1, 1]} : vector<64x128xf32> to vector<8x128xf32>
    %31 = arith.addf %29, %30 : vector<8x128xf32>
    %32 = vector.extract_strided_slice %28 {offsets = [0, 128], sizes = [8, 128], strides = [1, 1]} : vector<8x256xf32> to vector<8x128xf32>
    %33 = arith.addf %32, %9 : vector<8x128xf32>
    %34 = arith.negf %31 : vector<8x128xf32>
    %35 = math.exp %34 : vector<8x128xf32>
    %cst_12 = arith.constant 1.000000e+00 : f32
    %36 = vector.broadcast %cst_12 : f32 to vector<8x128xf32>
    %37 = arith.addf %36, %35 : vector<8x128xf32>
    %38 = arith.divf %36, %37 : vector<8x128xf32>
    %39 = math.tanh %31 : vector<8x128xf32>
    %40 = vector.extract_strided_slice %38 {offsets = [0, 0], sizes = [8, 32], strides = [1, 1]} : vector<8x128xf32> to vector<8x32xf32>
    %41 = vector.extract_strided_slice %38 {offsets = [0, 32], sizes = [8, 32], strides = [1, 1]} : vector<8x128xf32> to vector<8x32xf32>
    %42 = vector.extract_strided_slice %39 {offsets = [0, 64], sizes = [8, 32], strides = [1, 1]} : vector<8x128xf32> to vector<8x32xf32>
    %43 = vector.extract_strided_slice %38 {offsets = [0, 96], sizes = [8, 32], strides = [1, 1]} : vector<8x128xf32> to vector<8x32xf32>
    %44 = arith.mulf %41, %24 : vector<8x32xf32>
    %45 = arith.mulf %40, %42 : vector<8x32xf32>
    %46 = arith.addf %44, %45 : vector<8x32xf32>
    %47 = math.tanh %46 : vector<8x32xf32>
    %48 = arith.mulf %43, %47 : vector<8x32xf32>
    %49 = arith.negf %33 : vector<8x128xf32>
    %50 = math.exp %49 : vector<8x128xf32>
    %cst_13 = arith.constant 1.000000e+00 : f32
    %51 = vector.broadcast %cst_13 : f32 to vector<8x128xf32>
    %52 = arith.addf %51, %50 : vector<8x128xf32>
    %53 = arith.divf %51, %52 : vector<8x128xf32>
    %54 = math.tanh %33 : vector<8x128xf32>
    %55 = vector.extract_strided_slice %53 {offsets = [0, 0], sizes = [8, 32], strides = [1, 1]} : vector<8x128xf32> to vector<8x32xf32>
    %56 = vector.extract_strided_slice %53 {offsets = [0, 32], sizes = [8, 32], strides = [1, 1]} : vector<8x128xf32> to vector<8x32xf32>
    %57 = vector.extract_strided_slice %54 {offsets = [0, 64], sizes = [8, 32], strides = [1, 1]} : vector<8x128xf32> to vector<8x32xf32>
    %58 = vector.extract_strided_slice %53 {offsets = [0, 96], sizes = [8, 32], strides = [1, 1]} : vector<8x128xf32> to vector<8x32xf32>
    %59 = arith.mulf %56, %10 : vector<8x32xf32>
    %60 = arith.mulf %55, %57 : vector<8x32xf32>
    %61 = arith.addf %59, %60 : vector<8x32xf32>
    %62 = math.tanh %61 : vector<8x32xf32>
    %63 = arith.mulf %58, %62 : vector<8x32xf32>
    %c0_14 = arith.constant 0 : index
    %c0_15 = arith.constant 0 : index
    %64 = vector.load %arg8[%c0_14, %c0_15] : memref<64x32xf32, #tpu.memory_space<vmem>>, vector<8x32xf32>
    tpu.vector_store %arg8[%c0_14, %c0_15], %63 {strides = array<i32>} : memref<64x32xf32, #tpu.memory_space<vmem>>, vector<8x32xf32>,
    %65 = tpu.concatenate %48, %63 in 1 : vector<8x32xf32>, vector<8x32xf32> -> vector<8x64xf32>
    %cst_16 = arith.constant dense<0.000000e+00> : vector<8x256xf32>
    %66 = tpu.matmul %65, %6, %cst_16 {dimension_numbers = #tpu.dot_dimension_numbers<[1], [0], [0], [1], [0, 0, 1, 1], [], []>} : vector<8x64xf32>, vector<64x256xf32>, vector<8x256xf32> -> vector<8x256xf32>
    %67 = vector.extract_strided_slice %66 {offsets = [0, 0], sizes = [8, 128], strides = [1, 1]} : vector<8x256xf32> to vector<8x128xf32>
    %68 = vector.extract_strided_slice %5 {offsets = [16, 0], sizes = [8, 128], strides = [1, 1]} : vector<64x128xf32> to vector<8x128xf32>
    %69 = arith.addf %67, %68 : vector<8x128xf32>
    %70 = vector.extract_strided_slice %66 {offsets = [0, 128], sizes = [8, 128], strides = [1, 1]} : vector<8x256xf32> to vector<8x128xf32>
    %71 = arith.addf %70, %9 : vector<8x128xf32>
    %72 = arith.negf %69 : vector<8x128xf32>
    %73 = math.exp %72 : vector<8x128xf32>
    %cst_17 = arith.constant 1.000000e+00 : f32
    %74 = vector.broadcast %cst_17 : f32 to vector<8x128xf32>
    %75 = arith.addf %74, %73 : vector<8x128xf32>
    %76 = arith.divf %74, %75 : vector<8x128xf32>
    %77 = math.tanh %69 : vector<8x128xf32>
    %78 = vector.extract_strided_slice %76 {offsets = [0, 0], sizes = [8, 32], strides = [1, 1]} : vector<8x128xf32> to vector<8x32xf32>
    %79 = vector.extract_strided_slice %76 {offsets = [0, 32], sizes = [8, 32], strides = [1, 1]} : vector<8x128xf32> to vector<8x32xf32>
    %80 = vector.extract_strided_slice %77 {offsets = [0, 64], sizes = [8, 32], strides = [1, 1]} : vector<8x128xf32> to vector<8x32xf32>
    %81 = vector.extract_strided_slice %76 {offsets = [0, 96], sizes = [8, 32], strides = [1, 1]} : vector<8x128xf32> to vector<8x32xf32>
    %82 = arith.mulf %79, %46 : vector<8x32xf32>
    %83 = arith.mulf %78, %80 : vector<8x32xf32>
    %84 = arith.addf %82, %83 : vector<8x32xf32>
    %85 = math.tanh %84 : vector<8x32xf32>
    %86 = arith.mulf %81, %85 : vector<8x32xf32>
    %87 = arith.negf %71 : vector<8x128xf32>
    %88 = math.exp %87 : vector<8x128xf32>
    %cst_18 = arith.constant 1.000000e+00 : f32
    %89 = vector.broadcast %cst_18 : f32 to vector<8x128xf32>
    %90 = arith.addf %89, %88 : vector<8x128xf32>
    %91 = arith.divf %89, %90 : vector<8x128xf32>
    %92 = math.tanh %71 : vector<8x128xf32>
    %93 = vector.extract_strided_slice %91 {offsets = [0, 0], sizes = [8, 32], strides = [1, 1]} : vector<8x128xf32> to vector<8x32xf32>
    %94 = vector.extract_strided_slice %91 {offsets = [0, 32], sizes = [8, 32], strides = [1, 1]} : vector<8x128xf32> to vector<8x32xf32>
    %95 = vector.extract_strided_slice %92 {offsets = [0, 64], sizes = [8, 32], strides = [1, 1]} : vector<8x128xf32> to vector<8x32xf32>
    %96 = vector.extract_strided_slice %91 {offsets = [0, 96], sizes = [8, 32], strides = [1, 1]} : vector<8x128xf32> to vector<8x32xf32>
    %97 = arith.mulf %94, %61 : vector<8x32xf32>
    %98 = arith.mulf %93, %95 : vector<8x32xf32>
    %99 = arith.addf %97, %98 : vector<8x32xf32>
    %100 = math.tanh %99 : vector<8x32xf32>
    %101 = arith.mulf %96, %100 : vector<8x32xf32>
    %c8 = arith.constant 8 : index
    %c0_19 = arith.constant 0 : index
    %102 = vector.load %arg8[%c8, %c0_19] : memref<64x32xf32, #tpu.memory_space<vmem>>, vector<8x32xf32>
    tpu.vector_store %arg8[%c8, %c0_19], %101 {strides = array<i32>} : memref<64x32xf32, #tpu.memory_space<vmem>>, vector<8x32xf32>,
    %103 = tpu.concatenate %86, %101 in 1 : vector<8x32xf32>, vector<8x32xf32> -> vector<8x64xf32>
    %cst_20 = arith.constant dense<0.000000e+00> : vector<8x256xf32>
    %104 = tpu.matmul %103, %6, %cst_20 {dimension_numbers = #tpu.dot_dimension_numbers<[1], [0], [0], [1], [0, 0, 1, 1], [], []>} : vector<8x64xf32>, vector<64x256xf32>, vector<8x256xf32> -> vector<8x256xf32>
    %105 = vector.extract_strided_slice %104 {offsets = [0, 0], sizes = [8, 128], strides = [1, 1]} : vector<8x256xf32> to vector<8x128xf32>
    %106 = vector.extract_strided_slice %5 {offsets = [24, 0], sizes = [8, 128], strides = [1, 1]} : vector<64x128xf32> to vector<8x128xf32>
    %107 = arith.addf %105, %106 : vector<8x128xf32>
    %108 = vector.extract_strided_slice %104 {offsets = [0, 128], sizes = [8, 128], strides = [1, 1]} : vector<8x256xf32> to vector<8x128xf32>
    %109 = arith.addf %108, %9 : vector<8x128xf32>
    %110 = arith.negf %107 : vector<8x128xf32>
    %111 = math.exp %110 : vector<8x128xf32>
    %cst_21 = arith.constant 1.000000e+00 : f32
    %112 = vector.broadcast %cst_21 : f32 to vector<8x128xf32>
    %113 = arith.addf %112, %111 : vector<8x128xf32>
    %114 = arith.divf %112, %113 : vector<8x128xf32>
    %115 = math.tanh %107 : vector<8x128xf32>
    %116 = vector.extract_strided_slice %114 {offsets = [0, 0], sizes = [8, 32], strides = [1, 1]} : vector<8x128xf32> to vector<8x32xf32>
    %117 = vector.extract_strided_slice %114 {offsets = [0, 32], sizes = [8, 32], strides = [1, 1]} : vector<8x128xf32> to vector<8x32xf32>
    %118 = vector.extract_strided_slice %115 {offsets = [0, 64], sizes = [8, 32], strides = [1, 1]} : vector<8x128xf32> to vector<8x32xf32>
    %119 = vector.extract_strided_slice %114 {offsets = [0, 96], sizes = [8, 32], strides = [1, 1]} : vector<8x128xf32> to vector<8x32xf32>
    %120 = arith.mulf %117, %84 : vector<8x32xf32>
    %121 = arith.mulf %116, %118 : vector<8x32xf32>
    %122 = arith.addf %120, %121 : vector<8x32xf32>
    %123 = math.tanh %122 : vector<8x32xf32>
    %124 = arith.mulf %119, %123 : vector<8x32xf32>
    %125 = arith.negf %109 : vector<8x128xf32>
    %126 = math.exp %125 : vector<8x128xf32>
    %cst_22 = arith.constant 1.000000e+00 : f32
    %127 = vector.broadcast %cst_22 : f32 to vector<8x128xf32>
    %128 = arith.addf %127, %126 : vector<8x128xf32>
    %129 = arith.divf %127, %128 : vector<8x128xf32>
    %130 = math.tanh %109 : vector<8x128xf32>
    %131 = vector.extract_strided_slice %129 {offsets = [0, 0], sizes = [8, 32], strides = [1, 1]} : vector<8x128xf32> to vector<8x32xf32>
    %132 = vector.extract_strided_slice %129 {offsets = [0, 32], sizes = [8, 32], strides = [1, 1]} : vector<8x128xf32> to vector<8x32xf32>
    %133 = vector.extract_strided_slice %130 {offsets = [0, 64], sizes = [8, 32], strides = [1, 1]} : vector<8x128xf32> to vector<8x32xf32>
    %134 = vector.extract_strided_slice %129 {offsets = [0, 96], sizes = [8, 32], strides = [1, 1]} : vector<8x128xf32> to vector<8x32xf32>
    %135 = arith.mulf %132, %99 : vector<8x32xf32>
    %136 = arith.mulf %131, %133 : vector<8x32xf32>
    %137 = arith.addf %135, %136 : vector<8x32xf32>
    %138 = math.tanh %137 : vector<8x32xf32>
    %139 = arith.mulf %134, %138 : vector<8x32xf32>
    %c16 = arith.constant 16 : index
    %c0_23 = arith.constant 0 : index
    %140 = vector.load %arg8[%c16, %c0_23] : memref<64x32xf32, #tpu.memory_space<vmem>>, vector<8x32xf32>
    tpu.vector_store %arg8[%c16, %c0_23], %139 {strides = array<i32>} : memref<64x32xf32, #tpu.memory_space<vmem>>, vector<8x32xf32>,
    %141 = tpu.concatenate %124, %139 in 1 : vector<8x32xf32>, vector<8x32xf32> -> vector<8x64xf32>
    %cst_24 = arith.constant dense<0.000000e+00> : vector<8x256xf32>
    %142 = tpu.matmul %141, %6, %cst_24 {dimension_numbers = #tpu.dot_dimension_numbers<[1], [0], [0], [1], [0, 0, 1, 1], [], []>} : vector<8x64xf32>, vector<64x256xf32>, vector<8x256xf32> -> vector<8x256xf32>
    %143 = vector.extract_strided_slice %142 {offsets = [0, 0], sizes = [8, 128], strides = [1, 1]} : vector<8x256xf32> to vector<8x128xf32>
    %144 = vector.extract_strided_slice %5 {offsets = [32, 0], sizes = [8, 128], strides = [1, 1]} : vector<64x128xf32> to vector<8x128xf32>
    %145 = arith.addf %143, %144 : vector<8x128xf32>
    %146 = vector.extract_strided_slice %142 {offsets = [0, 128], sizes = [8, 128], strides = [1, 1]} : vector<8x256xf32> to vector<8x128xf32>
    %147 = arith.addf %146, %9 : vector<8x128xf32>
    %148 = arith.negf %145 : vector<8x128xf32>
    %149 = math.exp %148 : vector<8x128xf32>
    %cst_25 = arith.constant 1.000000e+00 : f32
    %150 = vector.broadcast %cst_25 : f32 to vector<8x128xf32>
    %151 = arith.addf %150, %149 : vector<8x128xf32>
    %152 = arith.divf %150, %151 : vector<8x128xf32>
    %153 = math.tanh %145 : vector<8x128xf32>
    %154 = vector.extract_strided_slice %152 {offsets = [0, 0], sizes = [8, 32], strides = [1, 1]} : vector<8x128xf32> to vector<8x32xf32>
    %155 = vector.extract_strided_slice %152 {offsets = [0, 32], sizes = [8, 32], strides = [1, 1]} : vector<8x128xf32> to vector<8x32xf32>
    %156 = vector.extract_strided_slice %153 {offsets = [0, 64], sizes = [8, 32], strides = [1, 1]} : vector<8x128xf32> to vector<8x32xf32>
    %157 = vector.extract_strided_slice %152 {offsets = [0, 96], sizes = [8, 32], strides = [1, 1]} : vector<8x128xf32> to vector<8x32xf32>
    %158 = arith.mulf %155, %122 : vector<8x32xf32>
    %159 = arith.mulf %154, %156 : vector<8x32xf32>
    %160 = arith.addf %158, %159 : vector<8x32xf32>
    %161 = math.tanh %160 : vector<8x32xf32>
    %162 = arith.mulf %157, %161 : vector<8x32xf32>
    %163 = arith.negf %147 : vector<8x128xf32>
    %164 = math.exp %163 : vector<8x128xf32>
    %cst_26 = arith.constant 1.000000e+00 : f32
    %165 = vector.broadcast %cst_26 : f32 to vector<8x128xf32>
    %166 = arith.addf %165, %164 : vector<8x128xf32>
    %167 = arith.divf %165, %166 : vector<8x128xf32>
    %168 = math.tanh %147 : vector<8x128xf32>
    %169 = vector.extract_strided_slice %167 {offsets = [0, 0], sizes = [8, 32], strides = [1, 1]} : vector<8x128xf32> to vector<8x32xf32>
    %170 = vector.extract_strided_slice %167 {offsets = [0, 32], sizes = [8, 32], strides = [1, 1]} : vector<8x128xf32> to vector<8x32xf32>
    %171 = vector.extract_strided_slice %168 {offsets = [0, 64], sizes = [8, 32], strides = [1, 1]} : vector<8x128xf32> to vector<8x32xf32>
    %172 = vector.extract_strided_slice %167 {offsets = [0, 96], sizes = [8, 32], strides = [1, 1]} : vector<8x128xf32> to vector<8x32xf32>
    %173 = arith.mulf %170, %137 : vector<8x32xf32>
    %174 = arith.mulf %169, %171 : vector<8x32xf32>
    %175 = arith.addf %173, %174 : vector<8x32xf32>
    %176 = math.tanh %175 : vector<8x32xf32>
    %177 = arith.mulf %172, %176 : vector<8x32xf32>
    %c24 = arith.constant 24 : index
    %c0_27 = arith.constant 0 : index
    %178 = vector.load %arg8[%c24, %c0_27] : memref<64x32xf32, #tpu.memory_space<vmem>>, vector<8x32xf32>
    tpu.vector_store %arg8[%c24, %c0_27], %177 {strides = array<i32>} : memref<64x32xf32, #tpu.memory_space<vmem>>, vector<8x32xf32>,
    %179 = tpu.concatenate %162, %177 in 1 : vector<8x32xf32>, vector<8x32xf32> -> vector<8x64xf32>
    %cst_28 = arith.constant dense<0.000000e+00> : vector<8x256xf32>
    %180 = tpu.matmul %179, %6, %cst_28 {dimension_numbers = #tpu.dot_dimension_numbers<[1], [0], [0], [1], [0, 0, 1, 1], [], []>} : vector<8x64xf32>, vector<64x256xf32>, vector<8x256xf32> -> vector<8x256xf32>
    %181 = vector.extract_strided_slice %180 {offsets = [0, 0], sizes = [8, 128], strides = [1, 1]} : vector<8x256xf32> to vector<8x128xf32>
    %182 = vector.extract_strided_slice %5 {offsets = [40, 0], sizes = [8, 128], strides = [1, 1]} : vector<64x128xf32> to vector<8x128xf32>
    %183 = arith.addf %181, %182 : vector<8x128xf32>
    %184 = vector.extract_strided_slice %180 {offsets = [0, 128], sizes = [8, 128], strides = [1, 1]} : vector<8x256xf32> to vector<8x128xf32>
    %185 = arith.addf %184, %9 : vector<8x128xf32>
    %186 = arith.negf %183 : vector<8x128xf32>
    %187 = math.exp %186 : vector<8x128xf32>
    %cst_29 = arith.constant 1.000000e+00 : f32
    %188 = vector.broadcast %cst_29 : f32 to vector<8x128xf32>
    %189 = arith.addf %188, %187 : vector<8x128xf32>
    %190 = arith.divf %188, %189 : vector<8x128xf32>
    %191 = math.tanh %183 : vector<8x128xf32>
    %192 = vector.extract_strided_slice %190 {offsets = [0, 0], sizes = [8, 32], strides = [1, 1]} : vector<8x128xf32> to vector<8x32xf32>
    %193 = vector.extract_strided_slice %190 {offsets = [0, 32], sizes = [8, 32], strides = [1, 1]} : vector<8x128xf32> to vector<8x32xf32>
    %194 = vector.extract_strided_slice %191 {offsets = [0, 64], sizes = [8, 32], strides = [1, 1]} : vector<8x128xf32> to vector<8x32xf32>
    %195 = vector.extract_strided_slice %190 {offsets = [0, 96], sizes = [8, 32], strides = [1, 1]} : vector<8x128xf32> to vector<8x32xf32>
    %196 = arith.mulf %193, %160 : vector<8x32xf32>
    %197 = arith.mulf %192, %194 : vector<8x32xf32>
    %198 = arith.addf %196, %197 : vector<8x32xf32>
    %199 = math.tanh %198 : vector<8x32xf32>
    %200 = arith.mulf %195, %199 : vector<8x32xf32>
    %201 = arith.negf %185 : vector<8x128xf32>
    %202 = math.exp %201 : vector<8x128xf32>
    %cst_30 = arith.constant 1.000000e+00 : f32
    %203 = vector.broadcast %cst_30 : f32 to vector<8x128xf32>
    %204 = arith.addf %203, %202 : vector<8x128xf32>
    %205 = arith.divf %203, %204 : vector<8x128xf32>
    %206 = math.tanh %185 : vector<8x128xf32>
    %207 = vector.extract_strided_slice %205 {offsets = [0, 0], sizes = [8, 32], strides = [1, 1]} : vector<8x128xf32> to vector<8x32xf32>
    %208 = vector.extract_strided_slice %205 {offsets = [0, 32], sizes = [8, 32], strides = [1, 1]} : vector<8x128xf32> to vector<8x32xf32>
    %209 = vector.extract_strided_slice %206 {offsets = [0, 64], sizes = [8, 32], strides = [1, 1]} : vector<8x128xf32> to vector<8x32xf32>
    %210 = vector.extract_strided_slice %205 {offsets = [0, 96], sizes = [8, 32], strides = [1, 1]} : vector<8x128xf32> to vector<8x32xf32>
    %211 = arith.mulf %208, %175 : vector<8x32xf32>
    %212 = arith.mulf %207, %209 : vector<8x32xf32>
    %213 = arith.addf %211, %212 : vector<8x32xf32>
    %214 = math.tanh %213 : vector<8x32xf32>
    %215 = arith.mulf %210, %214 : vector<8x32xf32>
    %c32 = arith.constant 32 : index
    %c0_31 = arith.constant 0 : index
    %216 = vector.load %arg8[%c32, %c0_31] : memref<64x32xf32, #tpu.memory_space<vmem>>, vector<8x32xf32>
    tpu.vector_store %arg8[%c32, %c0_31], %215 {strides = array<i32>} : memref<64x32xf32, #tpu.memory_space<vmem>>, vector<8x32xf32>,
    %217 = tpu.concatenate %200, %215 in 1 : vector<8x32xf32>, vector<8x32xf32> -> vector<8x64xf32>
    %cst_32 = arith.constant dense<0.000000e+00> : vector<8x256xf32>
    %218 = tpu.matmul %217, %6, %cst_32 {dimension_numbers = #tpu.dot_dimension_numbers<[1], [0], [0], [1], [0, 0, 1, 1], [], []>} : vector<8x64xf32>, vector<64x256xf32>, vector<8x256xf32> -> vector<8x256xf32>
    %219 = vector.extract_strided_slice %218 {offsets = [0, 0], sizes = [8, 128], strides = [1, 1]} : vector<8x256xf32> to vector<8x128xf32>
    %220 = vector.extract_strided_slice %5 {offsets = [48, 0], sizes = [8, 128], strides = [1, 1]} : vector<64x128xf32> to vector<8x128xf32>
    %221 = arith.addf %219, %220 : vector<8x128xf32>
    %222 = vector.extract_strided_slice %218 {offsets = [0, 128], sizes = [8, 128], strides = [1, 1]} : vector<8x256xf32> to vector<8x128xf32>
    %223 = arith.addf %222, %9 : vector<8x128xf32>
    %224 = arith.negf %221 : vector<8x128xf32>
    %225 = math.exp %224 : vector<8x128xf32>
    %cst_33 = arith.constant 1.000000e+00 : f32
    %226 = vector.broadcast %cst_33 : f32 to vector<8x128xf32>
    %227 = arith.addf %226, %225 : vector<8x128xf32>
    %228 = arith.divf %226, %227 : vector<8x128xf32>
    %229 = math.tanh %221 : vector<8x128xf32>
    %230 = vector.extract_strided_slice %228 {offsets = [0, 0], sizes = [8, 32], strides = [1, 1]} : vector<8x128xf32> to vector<8x32xf32>
    %231 = vector.extract_strided_slice %228 {offsets = [0, 32], sizes = [8, 32], strides = [1, 1]} : vector<8x128xf32> to vector<8x32xf32>
    %232 = vector.extract_strided_slice %229 {offsets = [0, 64], sizes = [8, 32], strides = [1, 1]} : vector<8x128xf32> to vector<8x32xf32>
    %233 = vector.extract_strided_slice %228 {offsets = [0, 96], sizes = [8, 32], strides = [1, 1]} : vector<8x128xf32> to vector<8x32xf32>
    %234 = arith.mulf %231, %198 : vector<8x32xf32>
    %235 = arith.mulf %230, %232 : vector<8x32xf32>
    %236 = arith.addf %234, %235 : vector<8x32xf32>
    %237 = math.tanh %236 : vector<8x32xf32>
    %238 = arith.mulf %233, %237 : vector<8x32xf32>
    %239 = arith.negf %223 : vector<8x128xf32>
    %240 = math.exp %239 : vector<8x128xf32>
    %cst_34 = arith.constant 1.000000e+00 : f32
    %241 = vector.broadcast %cst_34 : f32 to vector<8x128xf32>
    %242 = arith.addf %241, %240 : vector<8x128xf32>
    %243 = arith.divf %241, %242 : vector<8x128xf32>
    %244 = math.tanh %223 : vector<8x128xf32>
    %245 = vector.extract_strided_slice %243 {offsets = [0, 0], sizes = [8, 32], strides = [1, 1]} : vector<8x128xf32> to vector<8x32xf32>
    %246 = vector.extract_strided_slice %243 {offsets = [0, 32], sizes = [8, 32], strides = [1, 1]} : vector<8x128xf32> to vector<8x32xf32>
    %247 = vector.extract_strided_slice %244 {offsets = [0, 64], sizes = [8, 32], strides = [1, 1]} : vector<8x128xf32> to vector<8x32xf32>
    %248 = vector.extract_strided_slice %243 {offsets = [0, 96], sizes = [8, 32], strides = [1, 1]} : vector<8x128xf32> to vector<8x32xf32>
    %249 = arith.mulf %246, %213 : vector<8x32xf32>
    %250 = arith.mulf %245, %247 : vector<8x32xf32>
    %251 = arith.addf %249, %250 : vector<8x32xf32>
    %252 = math.tanh %251 : vector<8x32xf32>
    %253 = arith.mulf %248, %252 : vector<8x32xf32>
    %c40 = arith.constant 40 : index
    %c0_35 = arith.constant 0 : index
    %254 = vector.load %arg8[%c40, %c0_35] : memref<64x32xf32, #tpu.memory_space<vmem>>, vector<8x32xf32>
    tpu.vector_store %arg8[%c40, %c0_35], %253 {strides = array<i32>} : memref<64x32xf32, #tpu.memory_space<vmem>>, vector<8x32xf32>,
    %255 = tpu.concatenate %238, %253 in 1 : vector<8x32xf32>, vector<8x32xf32> -> vector<8x64xf32>
    %cst_36 = arith.constant dense<0.000000e+00> : vector<8x256xf32>
    %256 = tpu.matmul %255, %6, %cst_36 {dimension_numbers = #tpu.dot_dimension_numbers<[1], [0], [0], [1], [0, 0, 1, 1], [], []>} : vector<8x64xf32>, vector<64x256xf32>, vector<8x256xf32> -> vector<8x256xf32>
    %257 = vector.extract_strided_slice %256 {offsets = [0, 0], sizes = [8, 128], strides = [1, 1]} : vector<8x256xf32> to vector<8x128xf32>
    %258 = vector.extract_strided_slice %5 {offsets = [56, 0], sizes = [8, 128], strides = [1, 1]} : vector<64x128xf32> to vector<8x128xf32>
    %259 = arith.addf %257, %258 : vector<8x128xf32>
    %260 = vector.extract_strided_slice %256 {offsets = [0, 128], sizes = [8, 128], strides = [1, 1]} : vector<8x256xf32> to vector<8x128xf32>
    %261 = arith.addf %260, %9 : vector<8x128xf32>
    %262 = arith.negf %259 : vector<8x128xf32>
    %263 = math.exp %262 : vector<8x128xf32>
    %cst_37 = arith.constant 1.000000e+00 : f32
    %264 = vector.broadcast %cst_37 : f32 to vector<8x128xf32>
    %265 = arith.addf %264, %263 : vector<8x128xf32>
    %266 = arith.divf %264, %265 : vector<8x128xf32>
    %267 = math.tanh %259 : vector<8x128xf32>
    %268 = vector.extract_strided_slice %266 {offsets = [0, 0], sizes = [8, 32], strides = [1, 1]} : vector<8x128xf32> to vector<8x32xf32>
    %269 = vector.extract_strided_slice %266 {offsets = [0, 32], sizes = [8, 32], strides = [1, 1]} : vector<8x128xf32> to vector<8x32xf32>
    %270 = vector.extract_strided_slice %267 {offsets = [0, 64], sizes = [8, 32], strides = [1, 1]} : vector<8x128xf32> to vector<8x32xf32>
    %271 = vector.extract_strided_slice %266 {offsets = [0, 96], sizes = [8, 32], strides = [1, 1]} : vector<8x128xf32> to vector<8x32xf32>
    %272 = arith.mulf %269, %236 : vector<8x32xf32>
    %273 = arith.mulf %268, %270 : vector<8x32xf32>
    %274 = arith.addf %272, %273 : vector<8x32xf32>
    %275 = math.tanh %274 : vector<8x32xf32>
    %276 = arith.mulf %271, %275 : vector<8x32xf32>
    %277 = arith.negf %261 : vector<8x128xf32>
    %278 = math.exp %277 : vector<8x128xf32>
    %cst_38 = arith.constant 1.000000e+00 : f32
    %279 = vector.broadcast %cst_38 : f32 to vector<8x128xf32>
    %280 = arith.addf %279, %278 : vector<8x128xf32>
    %281 = arith.divf %279, %280 : vector<8x128xf32>
    %282 = math.tanh %261 : vector<8x128xf32>
    %283 = vector.extract_strided_slice %281 {offsets = [0, 0], sizes = [8, 32], strides = [1, 1]} : vector<8x128xf32> to vector<8x32xf32>
    %284 = vector.extract_strided_slice %281 {offsets = [0, 32], sizes = [8, 32], strides = [1, 1]} : vector<8x128xf32> to vector<8x32xf32>
    %285 = vector.extract_strided_slice %282 {offsets = [0, 64], sizes = [8, 32], strides = [1, 1]} : vector<8x128xf32> to vector<8x32xf32>
    %286 = vector.extract_strided_slice %281 {offsets = [0, 96], sizes = [8, 32], strides = [1, 1]} : vector<8x128xf32> to vector<8x32xf32>
    %287 = arith.mulf %284, %251 : vector<8x32xf32>
    %288 = arith.mulf %283, %285 : vector<8x32xf32>
    %289 = arith.addf %287, %288 : vector<8x32xf32>
    %290 = math.tanh %289 : vector<8x32xf32>
    %291 = arith.mulf %286, %290 : vector<8x32xf32>
    %c48 = arith.constant 48 : index
    %c0_39 = arith.constant 0 : index
    %292 = vector.load %arg8[%c48, %c0_39] : memref<64x32xf32, #tpu.memory_space<vmem>>, vector<8x32xf32>
    tpu.vector_store %arg8[%c48, %c0_39], %291 {strides = array<i32>} : memref<64x32xf32, #tpu.memory_space<vmem>>, vector<8x32xf32>,
    %293 = tpu.concatenate %276, %291 in 1 : vector<8x32xf32>, vector<8x32xf32> -> vector<8x64xf32>
    %294 = vector.extract_strided_slice %6 {offsets = [0, 128], sizes = [64, 128], strides = [1, 1]} : vector<64x256xf32> to vector<64x128xf32>
    %cst_40 = arith.constant dense<0.000000e+00> : vector<8x128xf32>
    %295 = tpu.matmul %293, %294, %cst_40 {dimension_numbers = #tpu.dot_dimension_numbers<[1], [0], [0], [1], [0, 0, 1, 1], [], []>} : vector<8x64xf32>, vector<64x128xf32>, vector<8x128xf32> -> vector<8x128xf32>
    %296 = arith.addf %295, %9 : vector<8x128xf32>
    %297 = arith.negf %296 : vector<8x128xf32>
    %298 = math.exp %297 : vector<8x128xf32>
    %cst_41 = arith.constant 1.000000e+00 : f32
    %299 = vector.broadcast %cst_41 : f32 to vector<8x128xf32>
    %300 = arith.addf %299, %298 : vector<8x128xf32>
    %301 = arith.divf %299, %300 : vector<8x128xf32>
    %302 = math.tanh %296 : vector<8x128xf32>
    %303 = vector.extract_strided_slice %301 {offsets = [0, 0], sizes = [8, 32], strides = [1, 1]} : vector<8x128xf32> to vector<8x32xf32>
    %304 = vector.extract_strided_slice %301 {offsets = [0, 32], sizes = [8, 32], strides = [1, 1]} : vector<8x128xf32> to vector<8x32xf32>
    %305 = vector.extract_strided_slice %302 {offsets = [0, 64], sizes = [8, 32], strides = [1, 1]} : vector<8x128xf32> to vector<8x32xf32>
    %306 = vector.extract_strided_slice %301 {offsets = [0, 96], sizes = [8, 32], strides = [1, 1]} : vector<8x128xf32> to vector<8x32xf32>
    %307 = arith.mulf %304, %289 : vector<8x32xf32>
    %308 = arith.mulf %303, %305 : vector<8x32xf32>
    %309 = arith.addf %307, %308 : vector<8x32xf32>
    %310 = math.tanh %309 : vector<8x32xf32>
    %311 = arith.mulf %306, %310 : vector<8x32xf32>
    %c56 = arith.constant 56 : index
    %c0_42 = arith.constant 0 : index
    %312 = vector.load %arg8[%c56, %c0_42] : memref<64x32xf32, #tpu.memory_space<vmem>>, vector<8x32xf32>
    tpu.vector_store %arg8[%c56, %c0_42], %311 {strides = array<i32>} : memref<64x32xf32, #tpu.memory_space<vmem>>, vector<8x32xf32>,
    %c0_43 = arith.constant 0 : index
    %c0_44 = arith.constant 0 : index
    %313 = vector.load %arg8[%c0_43, %c0_44] : memref<64x32xf32, #tpu.memory_space<vmem>>, vector<64x32xf32>
    %c0_45 = arith.constant 0 : index
    %c0_46 = arith.constant 0 : index
    %314 = vector.load %arg5[%c0_45, %c0_46] : memref<1x32xf32, #tpu.memory_space<vmem>>, vector<1x32xf32>
    %315 = vector.broadcast %314 : vector<1x32xf32> to vector<64x32xf32>
    %316 = arith.mulf %313, %315 : vector<64x32xf32>
    %cst_47 = arith.constant dense<0.000000e+00> : vector<64xf32>
    %317 = vector.multi_reduction <add>, %316, %cst_47 [1] : vector<64x32xf32> to vector<64xf32>
    %318 = vector.shape_cast %317 : vector<64xf32> to vector<64x1xf32>
    %c0_48 = arith.constant 0 : index
    %c0_49 = arith.constant 0 : index
    %319 = vector.load %arg6[%c0_48, %c0_49] : memref<1x1xf32, #tpu.memory_space<vmem>>, vector<1x1xf32>
    %320 = vector.broadcast %319 : vector<1x1xf32> to vector<64x1xf32>
    %321 = arith.addf %318, %320 : vector<64x1xf32>
    %c0_50 = arith.constant 0 : index
    %c0_51 = arith.constant 0 : index
    %322 = vector.load %arg7[%c0_50, %c0_51] : memref<64x1xf32, #tpu.memory_space<vmem>>, vector<64x1xf32>
    tpu.vector_store %arg7[%c0_50, %c0_51], %321 {strides = array<i32>} : memref<64x1xf32, #tpu.memory_space<vmem>>, vector<64x1xf32>,
    return
  }
}

</mosaic_0001>

<llo_original>
// kernel: tpu_custom_call.1
$region0: #{tpu_custom_call.1}
  #allocation0 [shape = 'u32[]', space=smem, size = 0x4, offset = 0x4, fixed_abs, tag = 'smem constant byte address 0x4 - core index']
  #allocation1 [shape = 'u32[144,128]{1,0:T(1,128)}', space=vmem, size = 0x12000, scoped, tag = 'internal scratch']
  #allocation2 [shape = 'f32[64,32]{1,0:T(8,128)}', space=vmem, size = 0x8000, scoped, tag = 'scratch operand']
  #allocation3 [shape = 'f32[1,1]{1,0:T(1,128)S(1)}', space=vmem, size = 0x200, scoped, tag = 'scoped memory for tpu_custom_call.1']
  %s0 = inlined_call_operand.vmem [shape: f32[64,4], index: 0, kind: input, shape index: {}]
  %s1 = inlined_call_operand.vmem [shape: f32[4,128], index: 1, kind: input, shape index: {}]
  %s2 = inlined_call_operand.vmem [shape: f32[1,128], index: 2, kind: input, shape index: {}]
  %s3 = inlined_call_operand.hbm [shape: f32[64,256], index: 3, kind: input, shape index: {}]
  %s4 = inlined_call_operand.vmem [shape: f32[1,128], index: 4, kind: input, shape index: {}]
  %s5 = inlined_call_operand.vmem [shape: f32[1,32], index: 5, kind: input, shape index: {}]
  %s6 = inlined_call_operand.<no memory space> [shape: f32[1,1], index: 6, kind: input, shape index: {}]
  %s7 = inlined_call_operand.vmem [shape: f32[64,1], index: 7, kind: output, shape index: {}]
  %s8 = sld [smem:[#allocation0]]
  $region42: #{tpu_custom_call.1} parent=0
    _
  %s10 = ssub.s32 1, %s8
  %s11 = scalar_select 0, %s10, %s8
  %v12 = vstv %s6
  %13 = vst [vmem:[#allocation3] sm:$0x1] %v12
  $region1: #{tpu_custom_call.1} parent=0
    #allocation4 [shape = 'u8[65536]{0}', space=vmem, size = 0x10000, scoped, tag = 'input window, operand 3, single buffered']
    #allocation5 [shape = 's32[1]{0}', space=sflag, size = 0x4, scoped, tag = 'scoped memory for tpu_custom_call.1']
    %14 = vsyncpa [#allocation5], 0
    // Predicated region
    $region2: #{tpu_custom_call.1} parent=1 // pred_check
      _
    $region3: #{tpu_custom_call.1} parent=1 // pred_check_branch
      %16 = sbr.rel (0) target = $region5
    $region4: #{tpu_custom_call.1} parent=1 // pred_region
      _
    $region5: #{tpu_custom_call.1} parent=1 // pred_fallthru
      _
    // Predicated region
    $region6: #{tpu_custom_call.1} parent=1 // pred_check
      _
    $region7: #{tpu_custom_call.1} parent=1 // pred_check_branch
      %18 = sbr.rel (0) target = $region9
    $region8: #{tpu_custom_call.1} parent=1 // pred_region
      _
    $region9: #{tpu_custom_call.1} parent=1 // pred_fallthru
      _
    // Predicated region
    $region10: #{tpu_custom_call.1} parent=1 // pred_check
      _
    $region11: #{tpu_custom_call.1} parent=1 // pred_check_branch
      %20 = sbr.rel (0) target = $region13
    $region12: #{tpu_custom_call.1} parent=1 // pred_region
      _
    $region13: #{tpu_custom_call.1} parent=1 // pred_fallthru
      _
    // Predicated region
    $region14: #{tpu_custom_call.1} parent=1 // pred_check
      _
    $region15: #{tpu_custom_call.1} parent=1 // pred_check_branch
      %22 = sbr.rel (0) target = $region17
    $region16: #{tpu_custom_call.1} parent=1 // pred_region
      %s24 = ssub.s32 2048, 2048
      %25 = vsyncadd [#allocation5], %s24
      %s26 = sshll.u32 [#allocation4], 4
      %s27 = int_to_ptr.vmem [resolvable:$true] %s26
      %32 = dma.hbm_to_vmem [thread:$0]  %s3, 2048, %s27, [#allocation5], 256, 256, 16
    $region17: #{tpu_custom_call.1} parent=1 // pred_fallthru
      _
    // Predicated region
    $region18: #{tpu_custom_call.1} parent=1 // pred_check
      _
    $region19: #{tpu_custom_call.1} parent=1 // pred_check_branch
      %34 = sbr.rel (0) target = $region21
    $region20: #{tpu_custom_call.1} parent=1 // pred_region
      _
    $region21: #{tpu_custom_call.1} parent=1 // pred_fallthru
      _
    // Predicated region
    $region22: #{tpu_custom_call.1} parent=1 // pred_check
      _
    $region23: #{tpu_custom_call.1} parent=1 // pred_check_branch
      %36 = sbr.rel (0) target = $region25
    $region24: #{tpu_custom_call.1} parent=1 // pred_region
      _
    $region25: #{tpu_custom_call.1} parent=1 // pred_fallthru
      _
    // Predicated region
    $region26: #{tpu_custom_call.1} parent=1 // pred_check
      _
    $region27: #{tpu_custom_call.1} parent=1 // pred_check_branch
      %38 = sbr.rel (0) target = $region29
    $region28: #{tpu_custom_call.1} parent=1 // pred_region
      _
    $region29: #{tpu_custom_call.1} parent=1 // pred_fallthru
      _
    // Predicated region
    $region30: #{tpu_custom_call.1} parent=1 // pred_check
      _
    $region31: #{tpu_custom_call.1} parent=1 // pred_check_branch
      %40 = sbr.rel (0) target = $region33
    $region32: #{tpu_custom_call.1} parent=1 // pred_region
      %41 = dma.done [#allocation5], 2048
    $region33: #{tpu_custom_call.1} parent=1 // pred_fallthru
      _
    %v42 = vld [vmem:[%s0] sm:$0xff]
    %v43 = vld [vmem:[%s0 + $0x8] sm:$0xff]
    %v44 = vld [vmem:[%s0 + $0x10] sm:$0xff]
    %v45 = vld [vmem:[%s0 + $0x18] sm:$0xff]
    %v46 = vld [vmem:[%s0 + $0x20] sm:$0xff]
    %v47 = vld [vmem:[%s0 + $0x28] sm:$0xff]
    %v48 = vld [vmem:[%s0 + $0x30] sm:$0xff]
    %v49 = vld [vmem:[%s0 + $0x38] sm:$0xff]
    %v50 = vld [vmem:[%s1] sm:$0xf]
    %v51 = vld [vmem:[%s2] sm:$0x1]
    %v53 = vlaneseq
    %v54 = vshrl.u32 %v53, 7
    %v55 = vsub.s32 0, %v54
    %v56 = vrot.slane %v51, %v55
    %vm58 = vcmask 31744
    %v60 = vsel %vm58, %v42, 0
    %v63 = vsel %vm58, %v43, 0
    %v66 = vsel %vm58, %v44, 0
    %v69 = vsel %vm58, %v45, 0
    %v72 = vsel %vm58, %v46, 0
    %v75 = vsel %vm58, %v47, 0
    %v78 = vsel %vm58, %v48, 0
    %v81 = vsel %vm58, %v49, 0
    %vm83 = vcmask 1043456
    %v85 = vsel %vm83, %v50, 0
    %87 = vmatprep.subr.mxu0 0.0
    %88 = vmatpush1.msra.mxu0 %v85
    %89 = vmatprep.subr.mxu0 0.0
    %90 = vmatpush1.msra.mxu0 0.0
    %91 = vmatprep.subr.mxu0 0.0
    %92 = vmatpush1.msra.mxu0 0.0
    %93 = vmatprep.subr.mxu0 0.0
    %94 = vmatpush1.msra.mxu0 0.0
    %95 = vmatprep.subr.mxu0 0.0
    %96 = vmatpush1.msra.mxu0 0.0
    %97 = vmatprep.subr.mxu0 0.0
    %98 = vmatpush1.msra.mxu0 0.0
    %99 = vmatprep.subr.mxu0 0.0
    %100 = vmatpush1.msra.mxu0 0.0
    %101 = vmatprep.subr.mxu0 0.0
    %102 = vmatpush1.msra.mxu0 0.0
    %103 = vmatprep.subr.mxu0 0.0
    %104 = vmatpush1.msra.mxu0 0.0
    %105 = vmatprep.subr.mxu0 0.0
    %106 = vmatpush1.msra.mxu0 0.0
    %107 = vmatprep.subr.mxu0 0.0
    %108 = vmatpush1.msra.mxu0 0.0
    %109 = vmatprep.subr.mxu0 0.0
    %110 = vmatpush1.msra.mxu0 0.0
    %111 = vmatprep.subr.mxu0 0.0
    %112 = vmatpush1.msra.mxu0 0.0
    %113 = vmatprep.subr.mxu0 0.0
    %114 = vmatpush1.msra.mxu0 0.0
    %115 = vmatprep.subr.mxu0 0.0
    %116 = vmatpush1.msra.mxu0 0.0
    %117 = vmatprep.subr.mxu0 0.0
    %118 = vmatpush1.msra.mxu0 0.0
    %119 = vmatprep.subr.mxu0 0.0
    %120 = vmatpush1.msra.mxu0 0.0
    %121 = vmatprep.subr.mxu0 0.0
    %122 = vmatpush1.msra.mxu0 0.0
    %123 = vmatprep.subr.mxu0 0.0
    %124 = vmatpush1.msra.mxu0 0.0
    %125 = vmatprep.subr.mxu0 0.0
    %126 = vmatpush1.msra.mxu0 0.0
    %127 = vmatprep.subr.mxu0 0.0
    %128 = vmatpush1.msra.mxu0 0.0
    %129 = vmatprep.subr.mxu0 0.0
    %130 = vmatpush1.msra.mxu0 0.0
    %131 = vmatprep.subr.mxu0 0.0
    %132 = vmatpush1.msra.mxu0 0.0
    %133 = vmatprep.subr.mxu0 0.0
    %134 = vmatpush1.msra.mxu0 0.0
    %135 = vmatprep.subr.mxu0 0.0
    %136 = vmatpush1.msra.mxu0 0.0
    %137 = vmatprep.subr.mxu0 0.0
    %138 = vmatpush1.msra.mxu0 0.0
    %139 = vmatprep.subr.mxu0 0.0
    %140 = vmatpush1.msra.mxu0 0.0
    %141 = vmatprep.subr.mxu0 0.0
    %142 = vmatpush1.msra.mxu0 0.0
    %143 = vmatprep.subr.mxu0 0.0
    %144 = vmatpush1.msra.mxu0 0.0
    %145 = vmatprep.subr.mxu0 0.0
    %146 = vmatpush1.msra.mxu0 0.0
    %147 = vmatprep.subr.mxu0 0.0
    %148 = vmatpush1.msra.mxu0 0.0
    %149 = vmatprep.subr.mxu0 0.0
    %150 = vmatpush1.msra.mxu0 0.0
    %151 = vmatprep.mubr.f32.mxu0 0.0
    %152 = vmatmul.mubr.f32.gmra.mrb[0].mxu0 %v60
    %v153 = vpop.f32.mrb[0].mxu0
    %v154 = vadd.f32 %v56, %v153
    %v155 = vpop.f32.mrb[0].mxu0
    %156 = vmatprep.mubr.f32.mxu0 0.0
    %157 = vmatmul.mubr.f32.gmra.mrb[0].mxu0 %v63
    %v158 = vpop.f32.mrb[0].mxu0
    %v159 = vadd.f32 %v56, %v158
    %v160 = vpop.f32.mrb[0].mxu0
    %161 = vmatprep.mubr.f32.mxu0 0.0
    %162 = vmatmul.mubr.f32.gmra.mrb[0].mxu0 %v66
    %v163 = vpop.f32.mrb[0].mxu0
    %v164 = vadd.f32 %v56, %v163
    %v165 = vpop.f32.mrb[0].mxu0
    %166 = vmatprep.mubr.f32.mxu0 0.0
    %167 = vmatmul.mubr.f32.gmra.mrb[0].mxu0 %v69
    %v168 = vpop.f32.mrb[0].mxu0
    %v169 = vadd.f32 %v56, %v168
    %v170 = vpop.f32.mrb[0].mxu0
    %171 = vmatprep.mubr.f32.mxu0 0.0
    %172 = vmatmul.mubr.f32.gmra.mrb[0].mxu0 %v72
    %v173 = vpop.f32.mrb[0].mxu0
    %v174 = vadd.f32 %v56, %v173
    %v175 = vpop.f32.mrb[0].mxu0
    %176 = vmatprep.mubr.f32.mxu0 0.0
    %177 = vmatmul.mubr.f32.gmra.mrb[0].mxu0 %v75
    %v178 = vpop.f32.mrb[0].mxu0
    %v179 = vadd.f32 %v56, %v178
    %v180 = vpop.f32.mrb[0].mxu0
    %181 = vmatprep.mubr.f32.mxu0 0.0
    %182 = vmatmul.mubr.f32.gmra.mrb[0].mxu0 %v78
    %v183 = vpop.f32.mrb[0].mxu0
    %v184 = vadd.f32 %v56, %v183
    %v185 = vpop.f32.mrb[0].mxu0
    %186 = vmatprep.mubr.f32.mxu0 0.0
    %187 = vmatmul.mubr.f32.gmra.mrb[0].mxu0 %v81
    %v188 = vpop.f32.mrb[0].mxu0
    %v189 = vadd.f32 %v56, %v188
    %v190 = vpop.f32.mrb[0].mxu0
    %191 = vdwg.mxu0
    %v192 = vld [vmem:[#allocation4] sm:$0xff]
    %v193 = vld [vmem:[#allocation4 + $0x8] sm:$0xff]
    %v194 = vld [vmem:[#allocation4 + $0x10] sm:$0xff]
    %v195 = vld [vmem:[#allocation4 + $0x18] sm:$0xff]
    %v196 = vld [vmem:[#allocation4 + $0x20] sm:$0xff]
    %v197 = vld [vmem:[#allocation4 + $0x28] sm:$0xff]
    %v198 = vld [vmem:[#allocation4 + $0x30] sm:$0xff]
    %v199 = vld [vmem:[#allocation4 + $0x38] sm:$0xff]
    %v200 = vld [vmem:[#allocation4 + $0x40] sm:$0xff]
    %v201 = vld [vmem:[#allocation4 + $0x48] sm:$0xff]
    %v202 = vld [vmem:[#allocation4 + $0x50] sm:$0xff]
    %v203 = vld [vmem:[#allocation4 + $0x58] sm:$0xff]
    %v204 = vld [vmem:[#allocation4 + $0x60] sm:$0xff]
    %v205 = vld [vmem:[#allocation4 + $0x68] sm:$0xff]
    %v206 = vld [vmem:[#allocation4 + $0x70] sm:$0xff]
    %v207 = vld [vmem:[#allocation4 + $0x78] sm:$0xff]
    %v208 = vld [vmem:[%s4] sm:$0x1]
    %v210 = vlaneseq
    %v211 = vshrl.u32 %v210, 7
    %v212 = vsub.s32 0, %v211
    %v213 = vrot.slane %v208, %v212
    %v215 = vxor.u32 %v154, 2147483648
    %v216 = vmul.f32 %v215, 1.442695
    %v217 = vpow.pop %v216
    %v218 = vadd.f32 %v217, 1.0
    %v219 = vrcp.pop %v218
    %v220 = vmul.f32 1.0, %v219
    %v221 = vtanh.pop %v154
    %v222 = vmul.f32 %v220, 0.0
    %224 = vrot.lane.b32.xlu0 %v221, 64
    %v225 = vpop.permute.xlu0 %224
    %v227 = vmul.f32 %v220, %v225
    %229 = vrot.lane.b32.xlu0 %v227, 32
    %v230 = vpop.permute.xlu0 %229
    %v232 = vadd.f32 %v222, %v230
    %v233 = vtanh.pop %v232
    %235 = vrot.lane.b32.xlu0 %v233, 64
    %v236 = vpop.permute.xlu0 %235
    %v238 = vmul.f32 %v220, %v236
    %240 = vrot.lane.b32.xlu0 %v238, 32
    %v241 = vpop.permute.xlu0 %240
    %vm243 = vcmask 261120
    %v244 = vsel %vm243, %v241, 0.0
    %vm245 = vcmask 523264
    %v247 = vsel %vm245, %v244, 0
    %249 = vmatprep.subr.mxu0 %v193
    %250 = vmatpush1.msra.mxu0 %v192
    %251 = vmatprep.subr.mxu0 %v195
    %252 = vmatpush1.msra.mxu0 %v194
    %253 = vmatprep.subr.mxu0 %v197
    %254 = vmatpush1.msra.mxu0 %v196
    %255 = vmatprep.subr.mxu0 %v199
    %256 = vmatpush1.msra.mxu0 %v198
    %257 = vmatprep.subr.mxu0 %v201
    %258 = vmatpush1.msra.mxu0 %v200
    %259 = vmatprep.subr.mxu0 %v203
    %260 = vmatpush1.msra.mxu0 %v202
    %261 = vmatprep.subr.mxu0 %v205
    %262 = vmatpush1.msra.mxu0 %v204
    %263 = vmatprep.subr.mxu0 %v207
    %264 = vmatpush1.msra.mxu0 %v206
    %265 = vmatprep.subr.mxu0 0.0
    %266 = vmatpush1.msra.mxu0 0.0
    %267 = vmatprep.subr.mxu0 0.0
    %268 = vmatpush1.msra.mxu0 0.0
    %269 = vmatprep.subr.mxu0 0.0
    %270 = vmatpush1.msra.mxu0 0.0
    %271 = vmatprep.subr.mxu0 0.0
    %272 = vmatpush1.msra.mxu0 0.0
    %273 = vmatprep.subr.mxu0 0.0
    %274 = vmatpush1.msra.mxu0 0.0
    %275 = vmatprep.subr.mxu0 0.0
    %276 = vmatpush1.msra.mxu0 0.0
    %277 = vmatprep.subr.mxu0 0.0
    %278 = vmatpush1.msra.mxu0 0.0
    %279 = vmatprep.subr.mxu0 0.0
    %280 = vmatpush1.msra.mxu0 0.0
    %281 = vmatprep.subr.mxu0 0.0
    %282 = vmatpush1.msra.mxu0 0.0
    %283 = vmatprep.subr.mxu0 0.0
    %284 = vmatpush1.msra.mxu0 0.0
    %285 = vmatprep.subr.mxu0 0.0
    %286 = vmatpush1.msra.mxu0 0.0
    %287 = vmatprep.subr.mxu0 0.0
    %288 = vmatpush1.msra.mxu0 0.0
    %289 = vmatprep.subr.mxu0 0.0
    %290 = vmatpush1.msra.mxu0 0.0
    %291 = vmatprep.subr.mxu0 0.0
    %292 = vmatpush1.msra.mxu0 0.0
    %293 = vmatprep.subr.mxu0 0.0
    %294 = vmatpush1.msra.mxu0 0.0
    %295 = vmatprep.subr.mxu0 0.0
    %296 = vmatpush1.msra.mxu0 0.0
    %297 = vmatprep.subr.mxu0 0.0
    %298 = vmatpush1.msra.mxu0 0.0
    %299 = vmatprep.subr.mxu0 0.0
    %300 = vmatpush1.msra.mxu0 0.0
    %301 = vmatprep.subr.mxu0 0.0
    %302 = vmatpush1.msra.mxu0 0.0
    %303 = vmatprep.subr.mxu0 0.0
    %304 = vmatpush1.msra.mxu0 0.0
    %305 = vmatprep.subr.mxu0 0.0
    %306 = vmatpush1.msra.mxu0 0.0
    %307 = vmatprep.subr.mxu0 0.0
    %308 = vmatpush1.msra.mxu0 0.0
    %309 = vmatprep.subr.mxu0 0.0
    %310 = vmatpush1.msra.mxu0 0.0
    %311 = vmatprep.subr.mxu0 0.0
    %312 = vmatpush1.msra.mxu0 0.0
    %313 = vmatprep.mubr.f32.mxu0 0.0
    %314 = vmatmul.mubr.f32.gmra.mrb[0].mxu0 %v247
    %v315 = vpop.f32.mrb[0].mxu0
    %v316 = vadd.f32 0.0, %v315
    %v317 = vpop.f32.mrb[0].mxu0
    %v318 = vadd.f32 0.0, %v317
    %319 = vdwg.mxu0
    %v320 = vadd.f32 %v316, %v159
    %v321 = vadd.f32 %v318, %v213
    %v322 = vxor.u32 %v320, 2147483648
    %v323 = vmul.f32 %v322, 1.442695
    %v324 = vpow.pop %v323
    %v325 = vadd.f32 %v324, 1.0
    %v326 = vrcp.pop %v325
    %v327 = vmul.f32 1.0, %v326
    %v328 = vtanh.pop %v320
    %v329 = vmul.f32 %v327, %v232
    %331 = vrot.lane.b32.xlu0 %v328, 64
    %v332 = vpop.permute.xlu0 %331
    %v334 = vmul.f32 %v327, %v332
    %336 = vrot.lane.b32.xlu0 %v334, 32
    %v337 = vpop.permute.xlu0 %336
    %v339 = vadd.f32 %v329, %v337
    %v340 = vtanh.pop %v339
    %342 = vrot.lane.b32.xlu0 %v340, 64
    %v343 = vpop.permute.xlu0 %342
    %v345 = vmul.f32 %v327, %v343
    %v346 = vxor.u32 %v321, 2147483648
    %v347 = vmul.f32 %v346, 1.442695
    %v348 = vpow.pop %v347
    %v349 = vadd.f32 %v348, 1.0
    %v350 = vrcp.pop %v349
    %v351 = vmul.f32 1.0, %v350
    %v352 = vtanh.pop %v321
    %v353 = vmul.f32 %v351, 0.0
    %355 = vrot.lane.b32.xlu0 %v352, 64
    %v356 = vpop.permute.xlu0 %355
    %v358 = vmul.f32 %v351, %v356
    %360 = vrot.lane.b32.xlu0 %v358, 32
    %v361 = vpop.permute.xlu0 %360
    %v363 = vadd.f32 %v353, %v361
    %v364 = vtanh.pop %v363
    %366 = vrot.lane.b32.xlu0 %v364, 64
    %v367 = vpop.permute.xlu0 %366
    %v369 = vmul.f32 %v351, %v367
    %371 = vrot.lane.b32.xlu0 %v369, 32
    %v372 = vpop.permute.xlu0 %371
    %374 = vst.msk [vmem:[#allocation2] sm:$0xff] %vm243, %v372
    %376 = vrot.lane.b32.xlu0 %v345, 32
    %v377 = vpop.permute.xlu0 %376
    %379 = vrot.lane.b32.xlu0 %v369, 64
    %v380 = vpop.permute.xlu0 %379
    %v382 = vsel %vm243, %v377, %v380
    %v384 = vsel %vm245, %v382, 0
    %386 = vmatprep.subr.mxu0 %v193
    %387 = vmatpush1.msra.mxu0 %v192
    %388 = vmatprep.subr.mxu0 %v195
    %389 = vmatpush1.msra.mxu0 %v194
    %390 = vmatprep.subr.mxu0 %v197
    %391 = vmatpush1.msra.mxu0 %v196
    %392 = vmatprep.subr.mxu0 %v199
    %393 = vmatpush1.msra.mxu0 %v198
    %394 = vmatprep.subr.mxu0 %v201
    %395 = vmatpush1.msra.mxu0 %v200
    %396 = vmatprep.subr.mxu0 %v203
    %397 = vmatpush1.msra.mxu0 %v202
    %398 = vmatprep.subr.mxu0 %v205
    %399 = vmatpush1.msra.mxu0 %v204
    %400 = vmatprep.subr.mxu0 %v207
    %401 = vmatpush1.msra.mxu0 %v206
    %402 = vmatprep.subr.mxu0 0.0
    %403 = vmatpush1.msra.mxu0 0.0
    %404 = vmatprep.subr.mxu0 0.0
    %405 = vmatpush1.msra.mxu0 0.0
    %406 = vmatprep.subr.mxu0 0.0
    %407 = vmatpush1.msra.mxu0 0.0
    %408 = vmatprep.subr.mxu0 0.0
    %409 = vmatpush1.msra.mxu0 0.0
    %410 = vmatprep.subr.mxu0 0.0
    %411 = vmatpush1.msra.mxu0 0.0
    %412 = vmatprep.subr.mxu0 0.0
    %413 = vmatpush1.msra.mxu0 0.0
    %414 = vmatprep.subr.mxu0 0.0
    %415 = vmatpush1.msra.mxu0 0.0
    %416 = vmatprep.subr.mxu0 0.0
    %417 = vmatpush1.msra.mxu0 0.0
    %418 = vmatprep.subr.mxu0 0.0
    %419 = vmatpush1.msra.mxu0 0.0
    %420 = vmatprep.subr.mxu0 0.0
    %421 = vmatpush1.msra.mxu0 0.0
    %422 = vmatprep.subr.mxu0 0.0
    %423 = vmatpush1.msra.mxu0 0.0
    %424 = vmatprep.subr.mxu0 0.0
    %425 = vmatpush1.msra.mxu0 0.0
    %426 = vmatprep.subr.mxu0 0.0
    %427 = vmatpush1.msra.mxu0 0.0
    %428 = vmatprep.subr.mxu0 0.0
    %429 = vmatpush1.msra.mxu0 0.0
    %430 = vmatprep.subr.mxu0 0.0
    %431 = vmatpush1.msra.mxu0 0.0
    %432 = vmatprep.subr.mxu0 0.0
    %433 = vmatpush1.msra.mxu0 0.0
    %434 = vmatprep.subr.mxu0 0.0
    %435 = vmatpush1.msra.mxu0 0.0
    %436 = vmatprep.subr.mxu0 0.0
    %437 = vmatpush1.msra.mxu0 0.0
    %438 = vmatprep.subr.mxu0 0.0
    %439 = vmatpush1.msra.mxu0 0.0
    %440 = vmatprep.subr.mxu0 0.0
    %441 = vmatpush1.msra.mxu0 0.0
    %442 = vmatprep.subr.mxu0 0.0
    %443 = vmatpush1.msra.mxu0 0.0
    %444 = vmatprep.subr.mxu0 0.0
    %445 = vmatpush1.msra.mxu0 0.0
    %446 = vmatprep.subr.mxu0 0.0
    %447 = vmatpush1.msra.mxu0 0.0
    %448 = vmatprep.subr.mxu0 0.0
    %449 = vmatpush1.msra.mxu0 0.0
    %450 = vmatprep.mubr.f32.mxu0 0.0
    %451 = vmatmul.mubr.f32.gmra.mrb[0].mxu0 %v384
    %v452 = vpop.f32.mrb[0].mxu0
    %v453 = vadd.f32 0.0, %v452
    %v454 = vpop.f32.mrb[0].mxu0
    %v455 = vadd.f32 0.0, %v454
    %456 = vdwg.mxu0
    %v457 = vadd.f32 %v453, %v164
    %v458 = vadd.f32 %v455, %v213
    %v459 = vxor.u32 %v457, 2147483648
    %v460 = vmul.f32 %v459, 1.442695
    %v461 = vpow.pop %v460
    %v462 = vadd.f32 %v461, 1.0
    %v463 = vrcp.pop %v462
    %v464 = vmul.f32 1.0, %v463
    %v465 = vtanh.pop %v457
    %v466 = vmul.f32 %v464, %v339
    %468 = vrot.lane.b32.xlu0 %v465, 64
    %v469 = vpop.permute.xlu0 %468
    %v471 = vmul.f32 %v464, %v469
    %473 = vrot.lane.b32.xlu0 %v471, 32
    %v474 = vpop.permute.xlu0 %473
    %v476 = vadd.f32 %v466, %v474
    %v477 = vtanh.pop %v476
    %479 = vrot.lane.b32.xlu0 %v477, 64
    %v480 = vpop.permute.xlu0 %479
    %v482 = vmul.f32 %v464, %v480
    %v483 = vxor.u32 %v458, 2147483648
    %v484 = vmul.f32 %v483, 1.442695
    %v485 = vpow.pop %v484
    %v486 = vadd.f32 %v485, 1.0
    %v487 = vrcp.pop %v486
    %v488 = vmul.f32 1.0, %v487
    %v489 = vtanh.pop %v458
    %v490 = vmul.f32 %v488, %v363
    %492 = vrot.lane.b32.xlu0 %v489, 64
    %v493 = vpop.permute.xlu0 %492
    %v495 = vmul.f32 %v488, %v493
    %497 = vrot.lane.b32.xlu0 %v495, 32
    %v498 = vpop.permute.xlu0 %497
    %v500 = vadd.f32 %v490, %v498
    %v501 = vtanh.pop %v500
    %503 = vrot.lane.b32.xlu0 %v501, 64
    %v504 = vpop.permute.xlu0 %503
    %v506 = vmul.f32 %v488, %v504
    %508 = vrot.lane.b32.xlu0 %v506, 32
    %v509 = vpop.permute.xlu0 %508
    %511 = vst.msk [vmem:[#allocation2 + $0x8] sm:$0xff] %vm243, %v509
    %513 = vrot.lane.b32.xlu0 %v482, 32
    %v514 = vpop.permute.xlu0 %513
    %516 = vrot.lane.b32.xlu0 %v506, 64
    %v517 = vpop.permute.xlu0 %516
    %v519 = vsel %vm243, %v514, %v517
    %v521 = vsel %vm245, %v519, 0
    %523 = vmatprep.subr.mxu0 %v193
    %524 = vmatpush1.msra.mxu0 %v192
    %525 = vmatprep.subr.mxu0 %v195
    %526 = vmatpush1.msra.mxu0 %v194
    %527 = vmatprep.subr.mxu0 %v197
    %528 = vmatpush1.msra.mxu0 %v196
    %529 = vmatprep.subr.mxu0 %v199
    %530 = vmatpush1.msra.mxu0 %v198
    %531 = vmatprep.subr.mxu0 %v201
    %532 = vmatpush1.msra.mxu0 %v200
    %533 = vmatprep.subr.mxu0 %v203
    %534 = vmatpush1.msra.mxu0 %v202
    %535 = vmatprep.subr.mxu0 %v205
    %536 = vmatpush1.msra.mxu0 %v204
    %537 = vmatprep.subr.mxu0 %v207
    %538 = vmatpush1.msra.mxu0 %v206
    %539 = vmatprep.subr.mxu0 0.0
    %540 = vmatpush1.msra.mxu0 0.0
    %541 = vmatprep.subr.mxu0 0.0
    %542 = vmatpush1.msra.mxu0 0.0
    %543 = vmatprep.subr.mxu0 0.0
    %544 = vmatpush1.msra.mxu0 0.0
    %545 = vmatprep.subr.mxu0 0.0
    %546 = vmatpush1.msra.mxu0 0.0
    %547 = vmatprep.subr.mxu0 0.0
    %548 = vmatpush1.msra.mxu0 0.0
    %549 = vmatprep.subr.mxu0 0.0
    %550 = vmatpush1.msra.mxu0 0.0
    %551 = vmatprep.subr.mxu0 0.0
    %552 = vmatpush1.msra.mxu0 0.0
    %553 = vmatprep.subr.mxu0 0.0
    %554 = vmatpush1.msra.mxu0 0.0
    %555 = vmatprep.subr.mxu0 0.0
    %556 = vmatpush1.msra.mxu0 0.0
    %557 = vmatprep.subr.mxu0 0.0
    %558 = vmatpush1.msra.mxu0 0.0
    %559 = vmatprep.subr.mxu0 0.0
    %560 = vmatpush1.msra.mxu0 0.0
    %561 = vmatprep.subr.mxu0 0.0
    %562 = vmatpush1.msra.mxu0 0.0
    %563 = vmatprep.subr.mxu0 0.0
    %564 = vmatpush1.msra.mxu0 0.0
    %565 = vmatprep.subr.mxu0 0.0
    %566 = vmatpush1.msra.mxu0 0.0
    %567 = vmatprep.subr.mxu0 0.0
    %568 = vmatpush1.msra.mxu0 0.0
    %569 = vmatprep.subr.mxu0 0.0
    %570 = vmatpush1.msra.mxu0 0.0
    %571 = vmatprep.subr.mxu0 0.0
    %572 = vmatpush1.msra.mxu0 0.0
    %573 = vmatprep.subr.mxu0 0.0
    %574 = vmatpush1.msra.mxu0 0.0
    %575 = vmatprep.subr.mxu0 0.0
    %576 = vmatpush1.msra.mxu0 0.0
    %577 = vmatprep.subr.mxu0 0.0
    %578 = vmatpush1.msra.mxu0 0.0
    %579 = vmatprep.subr.mxu0 0.0
    %580 = vmatpush1.msra.mxu0 0.0
    %581 = vmatprep.subr.mxu0 0.0
    %582 = vmatpush1.msra.mxu0 0.0
    %583 = vmatprep.subr.mxu0 0.0
    %584 = vmatpush1.msra.mxu0 0.0
    %585 = vmatprep.subr.mxu0 0.0
    %586 = vmatpush1.msra.mxu0 0.0
    %587 = vmatprep.mubr.f32.mxu0 0.0
    %588 = vmatmul.mubr.f32.gmra.mrb[0].mxu0 %v521
    %v589 = vpop.f32.mrb[0].mxu0
    %v590 = vadd.f32 0.0, %v589
    %v591 = vpop.f32.mrb[0].mxu0
    %v592 = vadd.f32 0.0, %v591
    %593 = vdwg.mxu0
    %v594 = vadd.f32 %v590, %v169
    %v595 = vadd.f32 %v592, %v213
    %v596 = vxor.u32 %v594, 2147483648
    %v597 = vmul.f32 %v596, 1.442695
    %v598 = vpow.pop %v597
    %v599 = vadd.f32 %v598, 1.0
    %v600 = vrcp.pop %v599
    %v601 = vmul.f32 1.0, %v600
    %v602 = vtanh.pop %v594
    %v603 = vmul.f32 %v601, %v476
    %605 = vrot.lane.b32.xlu0 %v602, 64
    %v606 = vpop.permute.xlu0 %605
    %v608 = vmul.f32 %v601, %v606
    %610 = vrot.lane.b32.xlu0 %v608, 32
    %v611 = vpop.permute.xlu0 %610
    %v613 = vadd.f32 %v603, %v611
    %v614 = vtanh.pop %v613
    %616 = vrot.lane.b32.xlu0 %v614, 64
    %v617 = vpop.permute.xlu0 %616
    %v619 = vmul.f32 %v601, %v617
    %v620 = vxor.u32 %v595, 2147483648
    %v621 = vmul.f32 %v620, 1.442695
    %v622 = vpow.pop %v621
    %v623 = vadd.f32 %v622, 1.0
    %v624 = vrcp.pop %v623
    %v625 = vmul.f32 1.0, %v624
    %v626 = vtanh.pop %v595
    %v627 = vmul.f32 %v625, %v500
    %629 = vrot.lane.b32.xlu0 %v626, 64
    %v630 = vpop.permute.xlu0 %629
    %v632 = vmul.f32 %v625, %v630
    %634 = vrot.lane.b32.xlu0 %v632, 32
    %v635 = vpop.permute.xlu0 %634
    %v637 = vadd.f32 %v627, %v635
    %v638 = vtanh.pop %v637
    %640 = vrot.lane.b32.xlu0 %v638, 64
    %v641 = vpop.permute.xlu0 %640
    %v643 = vmul.f32 %v625, %v641
    %645 = vrot.lane.b32.xlu0 %v643, 32
    %v646 = vpop.permute.xlu0 %645
    %648 = vst.msk [vmem:[#allocation2 + $0x10] sm:$0xff] %vm243, %v646
    %650 = vrot.lane.b32.xlu0 %v619, 32
    %v651 = vpop.permute.xlu0 %650
    %653 = vrot.lane.b32.xlu0 %v643, 64
    %v654 = vpop.permute.xlu0 %653
    %v656 = vsel %vm243, %v651, %v654
    %v658 = vsel %vm245, %v656, 0
    %660 = vmatprep.subr.mxu0 %v193
    %661 = vmatpush1.msra.mxu0 %v192
    %662 = vmatprep.subr.mxu0 %v195
    %663 = vmatpush1.msra.mxu0 %v194
    %664 = vmatprep.subr.mxu0 %v197
    %665 = vmatpush1.msra.mxu0 %v196
    %666 = vmatprep.subr.mxu0 %v199
    %667 = vmatpush1.msra.mxu0 %v198
    %668 = vmatprep.subr.mxu0 %v201
    %669 = vmatpush1.msra.mxu0 %v200
    %670 = vmatprep.subr.mxu0 %v203
    %671 = vmatpush1.msra.mxu0 %v202
    %672 = vmatprep.subr.mxu0 %v205
    %673 = vmatpush1.msra.mxu0 %v204
    %674 = vmatprep.subr.mxu0 %v207
    %675 = vmatpush1.msra.mxu0 %v206
    %676 = vmatprep.subr.mxu0 0.0
    %677 = vmatpush1.msra.mxu0 0.0
    %678 = vmatprep.subr.mxu0 0.0
    %679 = vmatpush1.msra.mxu0 0.0
    %680 = vmatprep.subr.mxu0 0.0
    %681 = vmatpush1.msra.mxu0 0.0
    %682 = vmatprep.subr.mxu0 0.0
    %683 = vmatpush1.msra.mxu0 0.0
    %684 = vmatprep.subr.mxu0 0.0
    %685 = vmatpush1.msra.mxu0 0.0
    %686 = vmatprep.subr.mxu0 0.0
    %687 = vmatpush1.msra.mxu0 0.0
    %688 = vmatprep.subr.mxu0 0.0
    %689 = vmatpush1.msra.mxu0 0.0
    %690 = vmatprep.subr.mxu0 0.0
    %691 = vmatpush1.msra.mxu0 0.0
    %692 = vmatprep.subr.mxu0 0.0
    %693 = vmatpush1.msra.mxu0 0.0
    %694 = vmatprep.subr.mxu0 0.0
    %695 = vmatpush1.msra.mxu0 0.0
    %696 = vmatprep.subr.mxu0 0.0
    %697 = vmatpush1.msra.mxu0 0.0
    %698 = vmatprep.subr.mxu0 0.0
    %699 = vmatpush1.msra.mxu0 0.0
    %700 = vmatprep.subr.mxu0 0.0
    %701 = vmatpush1.msra.mxu0 0.0
    %702 = vmatprep.subr.mxu0 0.0
    %703 = vmatpush1.msra.mxu0 0.0
    %704 = vmatprep.subr.mxu0 0.0
    %705 = vmatpush1.msra.mxu0 0.0
    %706 = vmatprep.subr.mxu0 0.0
    %707 = vmatpush1.msra.mxu0 0.0
    %708 = vmatprep.subr.mxu0 0.0
    %709 = vmatpush1.msra.mxu0 0.0
    %710 = vmatprep.subr.mxu0 0.0
    %711 = vmatpush1.msra.mxu0 0.0
    %712 = vmatprep.subr.mxu0 0.0
    %713 = vmatpush1.msra.mxu0 0.0
    %714 = vmatprep.subr.mxu0 0.0
    %715 = vmatpush1.msra.mxu0 0.0
    %716 = vmatprep.subr.mxu0 0.0
    %717 = vmatpush1.msra.mxu0 0.0
    %718 = vmatprep.subr.mxu0 0.0
    %719 = vmatpush1.msra.mxu0 0.0
    %720 = vmatprep.subr.mxu0 0.0
    %721 = vmatpush1.msra.mxu0 0.0
    %722 = vmatprep.subr.mxu0 0.0
    %723 = vmatpush1.msra.mxu0 0.0
    %724 = vmatprep.mubr.f32.mxu0 0.0
    %725 = vmatmul.mubr.f32.gmra.mrb[0].mxu0 %v658
    %v726 = vpop.f32.mrb[0].mxu0
    %v727 = vadd.f32 0.0, %v726
    %v728 = vpop.f32.mrb[0].mxu0
    %v729 = vadd.f32 0.0, %v728
    %730 = vdwg.mxu0
    %v731 = vadd.f32 %v727, %v174
    %v732 = vadd.f32 %v729, %v213
    %v733 = vxor.u32 %v731, 2147483648
    %v734 = vmul.f32 %v733, 1.442695
    %v735 = vpow.pop %v734
    %v736 = vadd.f32 %v735, 1.0
    %v737 = vrcp.pop %v736
    %v738 = vmul.f32 1.0, %v737
    %v739 = vtanh.pop %v731
    %v740 = vmul.f32 %v738, %v613
    %742 = vrot.lane.b32.xlu0 %v739, 64
    %v743 = vpop.permute.xlu0 %742
    %v745 = vmul.f32 %v738, %v743
    %747 = vrot.lane.b32.xlu0 %v745, 32
    %v748 = vpop.permute.xlu0 %747
    %v750 = vadd.f32 %v740, %v748
    %v751 = vtanh.pop %v750
    %753 = vrot.lane.b32.xlu0 %v751, 64
    %v754 = vpop.permute.xlu0 %753
    %v756 = vmul.f32 %v738, %v754
    %v757 = vxor.u32 %v732, 2147483648
    %v758 = vmul.f32 %v757, 1.442695
    %v759 = vpow.pop %v758
    %v760 = vadd.f32 %v759, 1.0
    %v761 = vrcp.pop %v760
    %v762 = vmul.f32 1.0, %v761
    %v763 = vtanh.pop %v732
    %v764 = vmul.f32 %v762, %v637
    %766 = vrot.lane.b32.xlu0 %v763, 64
    %v767 = vpop.permute.xlu0 %766
    %v769 = vmul.f32 %v762, %v767
    %771 = vrot.lane.b32.xlu0 %v769, 32
    %v772 = vpop.permute.xlu0 %771
    %v774 = vadd.f32 %v764, %v772
    %v775 = vtanh.pop %v774
    %777 = vrot.lane.b32.xlu0 %v775, 64
    %v778 = vpop.permute.xlu0 %777
    %v780 = vmul.f32 %v762, %v778
    %782 = vrot.lane.b32.xlu0 %v780, 32
    %v783 = vpop.permute.xlu0 %782
    %785 = vst.msk [vmem:[#allocation2 + $0x18] sm:$0xff] %vm243, %v783
    %787 = vrot.lane.b32.xlu0 %v756, 32
    %v788 = vpop.permute.xlu0 %787
    %790 = vrot.lane.b32.xlu0 %v780, 64
    %v791 = vpop.permute.xlu0 %790
    %v793 = vsel %vm243, %v788, %v791
    %v795 = vsel %vm245, %v793, 0
    %797 = vmatprep.subr.mxu0 %v193
    %798 = vmatpush1.msra.mxu0 %v192
    %799 = vmatprep.subr.mxu0 %v195
    %800 = vmatpush1.msra.mxu0 %v194
    %801 = vmatprep.subr.mxu0 %v197
    %802 = vmatpush1.msra.mxu0 %v196
    %803 = vmatprep.subr.mxu0 %v199
    %804 = vmatpush1.msra.mxu0 %v198
    %805 = vmatprep.subr.mxu0 %v201
    %806 = vmatpush1.msra.mxu0 %v200
    %807 = vmatprep.subr.mxu0 %v203
    %808 = vmatpush1.msra.mxu0 %v202
    %809 = vmatprep.subr.mxu0 %v205
    %810 = vmatpush1.msra.mxu0 %v204
    %811 = vmatprep.subr.mxu0 %v207
    %812 = vmatpush1.msra.mxu0 %v206
    %813 = vmatprep.subr.mxu0 0.0
    %814 = vmatpush1.msra.mxu0 0.0
    %815 = vmatprep.subr.mxu0 0.0
    %816 = vmatpush1.msra.mxu0 0.0
    %817 = vmatprep.subr.mxu0 0.0
    %818 = vmatpush1.msra.mxu0 0.0
    %819 = vmatprep.subr.mxu0 0.0
    %820 = vmatpush1.msra.mxu0 0.0
    %821 = vmatprep.subr.mxu0 0.0
    %822 = vmatpush1.msra.mxu0 0.0
    %823 = vmatprep.subr.mxu0 0.0
    %824 = vmatpush1.msra.mxu0 0.0
    %825 = vmatprep.subr.mxu0 0.0
    %826 = vmatpush1.msra.mxu0 0.0
    %827 = vmatprep.subr.mxu0 0.0
    %828 = vmatpush1.msra.mxu0 0.0
    %829 = vmatprep.subr.mxu0 0.0
    %830 = vmatpush1.msra.mxu0 0.0
    %831 = vmatprep.subr.mxu0 0.0
    %832 = vmatpush1.msra.mxu0 0.0
    %833 = vmatprep.subr.mxu0 0.0
    %834 = vmatpush1.msra.mxu0 0.0
    %835 = vmatprep.subr.mxu0 0.0
    %836 = vmatpush1.msra.mxu0 0.0
    %837 = vmatprep.subr.mxu0 0.0
    %838 = vmatpush1.msra.mxu0 0.0
    %839 = vmatprep.subr.mxu0 0.0
    %840 = vmatpush1.msra.mxu0 0.0
    %841 = vmatprep.subr.mxu0 0.0
    %842 = vmatpush1.msra.mxu0 0.0
    %843 = vmatprep.subr.mxu0 0.0
    %844 = vmatpush1.msra.mxu0 0.0
    %845 = vmatprep.subr.mxu0 0.0
    %846 = vmatpush1.msra.mxu0 0.0
    %847 = vmatprep.subr.mxu0 0.0
    %848 = vmatpush1.msra.mxu0 0.0
    %849 = vmatprep.subr.mxu0 0.0
    %850 = vmatpush1.msra.mxu0 0.0
    %851 = vmatprep.subr.mxu0 0.0
    %852 = vmatpush1.msra.mxu0 0.0
    %853 = vmatprep.subr.mxu0 0.0
    %854 = vmatpush1.msra.mxu0 0.0
    %855 = vmatprep.subr.mxu0 0.0
    %856 = vmatpush1.msra.mxu0 0.0
    %857 = vmatprep.subr.mxu0 0.0
    %858 = vmatpush1.msra.mxu0 0.0
    %859 = vmatprep.subr.mxu0 0.0
    %860 = vmatpush1.msra.mxu0 0.0
    %861 = vmatprep.mubr.f32.mxu0 0.0
    %862 = vmatmul.mubr.f32.gmra.mrb[0].mxu0 %v795
    %v863 = vpop.f32.mrb[0].mxu0
    %v864 = vadd.f32 0.0, %v863
    %v865 = vpop.f32.mrb[0].mxu0
    %v866 = vadd.f32 0.0, %v865
    %867 = vdwg.mxu0
    %v868 = vadd.f32 %v864, %v179
    %v869 = vadd.f32 %v866, %v213
    %v870 = vxor.u32 %v868, 2147483648
    %v871 = vmul.f32 %v870, 1.442695
    %v872 = vpow.pop %v871
    %v873 = vadd.f32 %v872, 1.0
    %v874 = vrcp.pop %v873
    %v875 = vmul.f32 1.0, %v874
    %v876 = vtanh.pop %v868
    %v877 = vmul.f32 %v875, %v750
    %879 = vrot.lane.b32.xlu0 %v876, 64
    %v880 = vpop.permute.xlu0 %879
    %v882 = vmul.f32 %v875, %v880
    %884 = vrot.lane.b32.xlu0 %v882, 32
    %v885 = vpop.permute.xlu0 %884
    %v887 = vadd.f32 %v877, %v885
    %v888 = vtanh.pop %v887
    %890 = vrot.lane.b32.xlu0 %v888, 64
    %v891 = vpop.permute.xlu0 %890
    %v893 = vmul.f32 %v875, %v891
    %v894 = vxor.u32 %v869, 2147483648
    %v895 = vmul.f32 %v894, 1.442695
    %v896 = vpow.pop %v895
    %v897 = vadd.f32 %v896, 1.0
    %v898 = vrcp.pop %v897
    %v899 = vmul.f32 1.0, %v898
    %v900 = vtanh.pop %v869
    %v901 = vmul.f32 %v899, %v774
    %903 = vrot.lane.b32.xlu0 %v900, 64
    %v904 = vpop.permute.xlu0 %903
    %v906 = vmul.f32 %v899, %v904
    %908 = vrot.lane.b32.xlu0 %v906, 32
    %v909 = vpop.permute.xlu0 %908
    %v911 = vadd.f32 %v901, %v909
    %v912 = vtanh.pop %v911
    %914 = vrot.lane.b32.xlu0 %v912, 64
    %v915 = vpop.permute.xlu0 %914
    %v917 = vmul.f32 %v899, %v915
    %919 = vrot.lane.b32.xlu0 %v917, 32
    %v920 = vpop.permute.xlu0 %919
    %922 = vst.msk [vmem:[#allocation2 + $0x20] sm:$0xff] %vm243, %v920
    %924 = vrot.lane.b32.xlu0 %v893, 32
    %v925 = vpop.permute.xlu0 %924
    %927 = vrot.lane.b32.xlu0 %v917, 64
    %v928 = vpop.permute.xlu0 %927
    %v930 = vsel %vm243, %v925, %v928
    %v932 = vsel %vm245, %v930, 0
    %934 = vmatprep.subr.mxu0 %v193
    %935 = vmatpush1.msra.mxu0 %v192
    %936 = vmatprep.subr.mxu0 %v195
    %937 = vmatpush1.msra.mxu0 %v194
    %938 = vmatprep.subr.mxu0 %v197
    %939 = vmatpush1.msra.mxu0 %v196
    %940 = vmatprep.subr.mxu0 %v199
    %941 = vmatpush1.msra.mxu0 %v198
    %942 = vmatprep.subr.mxu0 %v201
    %943 = vmatpush1.msra.mxu0 %v200
    %944 = vmatprep.subr.mxu0 %v203
    %945 = vmatpush1.msra.mxu0 %v202
    %946 = vmatprep.subr.mxu0 %v205
    %947 = vmatpush1.msra.mxu0 %v204
    %948 = vmatprep.subr.mxu0 %v207
    %949 = vmatpush1.msra.mxu0 %v206
    %950 = vmatprep.subr.mxu0 0.0
    %951 = vmatpush1.msra.mxu0 0.0
    %952 = vmatprep.subr.mxu0 0.0
    %953 = vmatpush1.msra.mxu0 0.0
    %954 = vmatprep.subr.mxu0 0.0
    %955 = vmatpush1.msra.mxu0 0.0
    %956 = vmatprep.subr.mxu0 0.0
    %957 = vmatpush1.msra.mxu0 0.0
    %958 = vmatprep.subr.mxu0 0.0
    %959 = vmatpush1.msra.mxu0 0.0
    %960 = vmatprep.subr.mxu0 0.0
    %961 = vmatpush1.msra.mxu0 0.0
    %962 = vmatprep.subr.mxu0 0.0
    %963 = vmatpush1.msra.mxu0 0.0
    %964 = vmatprep.subr.mxu0 0.0
    %965 = vmatpush1.msra.mxu0 0.0
    %966 = vmatprep.subr.mxu0 0.0
    %967 = vmatpush1.msra.mxu0 0.0
    %968 = vmatprep.subr.mxu0 0.0
    %969 = vmatpush1.msra.mxu0 0.0
    %970 = vmatprep.subr.mxu0 0.0
    %971 = vmatpush1.msra.mxu0 0.0
    %972 = vmatprep.subr.mxu0 0.0
    %973 = vmatpush1.msra.mxu0 0.0
    %974 = vmatprep.subr.mxu0 0.0
    %975 = vmatpush1.msra.mxu0 0.0
    %976 = vmatprep.subr.mxu0 0.0
    %977 = vmatpush1.msra.mxu0 0.0
    %978 = vmatprep.subr.mxu0 0.0
    %979 = vmatpush1.msra.mxu0 0.0
    %980 = vmatprep.subr.mxu0 0.0
    %981 = vmatpush1.msra.mxu0 0.0
    %982 = vmatprep.subr.mxu0 0.0
    %983 = vmatpush1.msra.mxu0 0.0
    %984 = vmatprep.subr.mxu0 0.0
    %985 = vmatpush1.msra.mxu0 0.0
    %986 = vmatprep.subr.mxu0 0.0
    %987 = vmatpush1.msra.mxu0 0.0
    %988 = vmatprep.subr.mxu0 0.0
    %989 = vmatpush1.msra.mxu0 0.0
    %990 = vmatprep.subr.mxu0 0.0
    %991 = vmatpush1.msra.mxu0 0.0
    %992 = vmatprep.subr.mxu0 0.0
    %993 = vmatpush1.msra.mxu0 0.0
    %994 = vmatprep.subr.mxu0 0.0
    %995 = vmatpush1.msra.mxu0 0.0
    %996 = vmatprep.subr.mxu0 0.0
    %997 = vmatpush1.msra.mxu0 0.0
    %998 = vmatprep.mubr.f32.mxu0 0.0
    %999 = vmatmul.mubr.f32.gmra.mrb[0].mxu0 %v932
    %v1000 = vpop.f32.mrb[0].mxu0
    %v1001 = vadd.f32 0.0, %v1000
    %v1002 = vpop.f32.mrb[0].mxu0
    %v1003 = vadd.f32 0.0, %v1002
    %1004 = vdwg.mxu0
    %v1005 = vadd.f32 %v1001, %v184
    %v1006 = vadd.f32 %v1003, %v213
    %v1007 = vxor.u32 %v1005, 2147483648
    %v1008 = vmul.f32 %v1007, 1.442695
    %v1009 = vpow.pop %v1008
    %v1010 = vadd.f32 %v1009, 1.0
    %v1011 = vrcp.pop %v1010
    %v1012 = vmul.f32 1.0, %v1011
    %v1013 = vtanh.pop %v1005
    %v1014 = vmul.f32 %v1012, %v887
    %1016 = vrot.lane.b32.xlu0 %v1013, 64
    %v1017 = vpop.permute.xlu0 %1016
    %v1019 = vmul.f32 %v1012, %v1017
    %1021 = vrot.lane.b32.xlu0 %v1019, 32
    %v1022 = vpop.permute.xlu0 %1021
    %v1024 = vadd.f32 %v1014, %v1022
    %v1025 = vtanh.pop %v1024
    %1027 = vrot.lane.b32.xlu0 %v1025, 64
    %v1028 = vpop.permute.xlu0 %1027
    %v1030 = vmul.f32 %v1012, %v1028
    %v1031 = vxor.u32 %v1006, 2147483648
    %v1032 = vmul.f32 %v1031, 1.442695
    %v1033 = vpow.pop %v1032
    %v1034 = vadd.f32 %v1033, 1.0
    %v1035 = vrcp.pop %v1034
    %v1036 = vmul.f32 1.0, %v1035
    %v1037 = vtanh.pop %v1006
    %v1038 = vmul.f32 %v1036, %v911
    %1040 = vrot.lane.b32.xlu0 %v1037, 64
    %v1041 = vpop.permute.xlu0 %1040
    %v1043 = vmul.f32 %v1036, %v1041
    %1045 = vrot.lane.b32.xlu0 %v1043, 32
    %v1046 = vpop.permute.xlu0 %1045
    %v1048 = vadd.f32 %v1038, %v1046
    %v1049 = vtanh.pop %v1048
    %1051 = vrot.lane.b32.xlu0 %v1049, 64
    %v1052 = vpop.permute.xlu0 %1051
    %v1054 = vmul.f32 %v1036, %v1052
    %1056 = vrot.lane.b32.xlu0 %v1054, 32
    %v1057 = vpop.permute.xlu0 %1056
    %1059 = vst.msk [vmem:[#allocation2 + $0x28] sm:$0xff] %vm243, %v1057
    %1061 = vrot.lane.b32.xlu0 %v1030, 32
    %v1062 = vpop.permute.xlu0 %1061
    %1064 = vrot.lane.b32.xlu0 %v1054, 64
    %v1065 = vpop.permute.xlu0 %1064
    %v1067 = vsel %vm243, %v1062, %v1065
    %v1069 = vsel %vm245, %v1067, 0
    %1071 = vmatprep.subr.mxu0 %v193
    %1072 = vmatpush1.msra.mxu0 %v192
    %1073 = vmatprep.subr.mxu0 %v195
    %1074 = vmatpush1.msra.mxu0 %v194
    %1075 = vmatprep.subr.mxu0 %v197
    %1076 = vmatpush1.msra.mxu0 %v196
    %1077 = vmatprep.subr.mxu0 %v199
    %1078 = vmatpush1.msra.mxu0 %v198
    %1079 = vmatprep.subr.mxu0 %v201
    %1080 = vmatpush1.msra.mxu0 %v200
    %1081 = vmatprep.subr.mxu0 %v203
    %1082 = vmatpush1.msra.mxu0 %v202
    %1083 = vmatprep.subr.mxu0 %v205
    %1084 = vmatpush1.msra.mxu0 %v204
    %1085 = vmatprep.subr.mxu0 %v207
    %1086 = vmatpush1.msra.mxu0 %v206
    %1087 = vmatprep.subr.mxu0 0.0
    %1088 = vmatpush1.msra.mxu0 0.0
    %1089 = vmatprep.subr.mxu0 0.0
    %1090 = vmatpush1.msra.mxu0 0.0
    %1091 = vmatprep.subr.mxu0 0.0
    %1092 = vmatpush1.msra.mxu0 0.0
    %1093 = vmatprep.subr.mxu0 0.0
    %1094 = vmatpush1.msra.mxu0 0.0
    %1095 = vmatprep.subr.mxu0 0.0
    %1096 = vmatpush1.msra.mxu0 0.0
    %1097 = vmatprep.subr.mxu0 0.0
    %1098 = vmatpush1.msra.mxu0 0.0
    %1099 = vmatprep.subr.mxu0 0.0
    %1100 = vmatpush1.msra.mxu0 0.0
    %1101 = vmatprep.subr.mxu0 0.0
    %1102 = vmatpush1.msra.mxu0 0.0
    %1103 = vmatprep.subr.mxu0 0.0
    %1104 = vmatpush1.msra.mxu0 0.0
    %1105 = vmatprep.subr.mxu0 0.0
    %1106 = vmatpush1.msra.mxu0 0.0
    %1107 = vmatprep.subr.mxu0 0.0
    %1108 = vmatpush1.msra.mxu0 0.0
    %1109 = vmatprep.subr.mxu0 0.0
    %1110 = vmatpush1.msra.mxu0 0.0
    %1111 = vmatprep.subr.mxu0 0.0
    %1112 = vmatpush1.msra.mxu0 0.0
    %1113 = vmatprep.subr.mxu0 0.0
    %1114 = vmatpush1.msra.mxu0 0.0
    %1115 = vmatprep.subr.mxu0 0.0
    %1116 = vmatpush1.msra.mxu0 0.0
    %1117 = vmatprep.subr.mxu0 0.0
    %1118 = vmatpush1.msra.mxu0 0.0
    %1119 = vmatprep.subr.mxu0 0.0
    %1120 = vmatpush1.msra.mxu0 0.0
    %1121 = vmatprep.subr.mxu0 0.0
    %1122 = vmatpush1.msra.mxu0 0.0
    %1123 = vmatprep.subr.mxu0 0.0
    %1124 = vmatpush1.msra.mxu0 0.0
    %1125 = vmatprep.subr.mxu0 0.0
    %1126 = vmatpush1.msra.mxu0 0.0
    %1127 = vmatprep.subr.mxu0 0.0
    %1128 = vmatpush1.msra.mxu0 0.0
    %1129 = vmatprep.subr.mxu0 0.0
    %1130 = vmatpush1.msra.mxu0 0.0
    %1131 = vmatprep.subr.mxu0 0.0
    %1132 = vmatpush1.msra.mxu0 0.0
    %1133 = vmatprep.subr.mxu0 0.0
    %1134 = vmatpush1.msra.mxu0 0.0
    %1135 = vmatprep.mubr.f32.mxu0 0.0
    %1136 = vmatmul.mubr.f32.gmra.mrb[0].mxu0 %v1069
    %v1137 = vpop.f32.mrb[0].mxu0
    %v1138 = vadd.f32 0.0, %v1137
    %v1139 = vpop.f32.mrb[0].mxu0
    %v1140 = vadd.f32 0.0, %v1139
    %1141 = vdwg.mxu0
    %v1142 = vadd.f32 %v1138, %v189
    %v1143 = vadd.f32 %v1140, %v213
    %v1144 = vxor.u32 %v1142, 2147483648
    %v1145 = vmul.f32 %v1144, 1.442695
    %v1146 = vpow.pop %v1145
    %v1147 = vadd.f32 %v1146, 1.0
    %v1148 = vrcp.pop %v1147
    %v1149 = vmul.f32 1.0, %v1148
    %v1150 = vtanh.pop %v1142
    %v1151 = vmul.f32 %v1149, %v1024
    %1153 = vrot.lane.b32.xlu0 %v1150, 64
    %v1154 = vpop.permute.xlu0 %1153
    %v1156 = vmul.f32 %v1149, %v1154
    %1158 = vrot.lane.b32.xlu0 %v1156, 32
    %v1159 = vpop.permute.xlu0 %1158
    %v1161 = vadd.f32 %v1151, %v1159
    %v1162 = vtanh.pop %v1161
    %1164 = vrot.lane.b32.xlu0 %v1162, 64
    %v1165 = vpop.permute.xlu0 %1164
    %v1167 = vmul.f32 %v1149, %v1165
    %v1168 = vxor.u32 %v1143, 2147483648
    %v1169 = vmul.f32 %v1168, 1.442695
    %v1170 = vpow.pop %v1169
    %v1171 = vadd.f32 %v1170, 1.0
    %v1172 = vrcp.pop %v1171
    %v1173 = vmul.f32 1.0, %v1172
    %v1174 = vtanh.pop %v1143
    %v1175 = vmul.f32 %v1173, %v1048
    %1177 = vrot.lane.b32.xlu0 %v1174, 64
    %v1178 = vpop.permute.xlu0 %1177
    %v1180 = vmul.f32 %v1173, %v1178
    %1182 = vrot.lane.b32.xlu0 %v1180, 32
    %v1183 = vpop.permute.xlu0 %1182
    %v1185 = vadd.f32 %v1175, %v1183
    %v1186 = vtanh.pop %v1185
    %1188 = vrot.lane.b32.xlu0 %v1186, 64
    %v1189 = vpop.permute.xlu0 %1188
    %v1191 = vmul.f32 %v1173, %v1189
    %1193 = vrot.lane.b32.xlu0 %v1191, 32
    %v1194 = vpop.permute.xlu0 %1193
    %1196 = vst.msk [vmem:[#allocation2 + $0x30] sm:$0xff] %vm243, %v1194
    %1198 = vrot.lane.b32.xlu0 %v1167, 32
    %v1199 = vpop.permute.xlu0 %1198
    %1201 = vrot.lane.b32.xlu0 %v1191, 64
    %v1202 = vpop.permute.xlu0 %1201
    %v1204 = vsel %vm243, %v1199, %v1202
    %v1206 = vsel %vm245, %v1204, 0
    %1208 = vmatprep.subr.mxu0 0.0
    %1209 = vmatpush1.msra.mxu0 %v193
    %1210 = vmatprep.subr.mxu0 0.0
    %1211 = vmatpush1.msra.mxu0 %v195
    %1212 = vmatprep.subr.mxu0 0.0
    %1213 = vmatpush1.msra.mxu0 %v197
    %1214 = vmatprep.subr.mxu0 0.0
    %1215 = vmatpush1.msra.mxu0 %v199
    %1216 = vmatprep.subr.mxu0 0.0
    %1217 = vmatpush1.msra.mxu0 %v201
    %1218 = vmatprep.subr.mxu0 0.0
    %1219 = vmatpush1.msra.mxu0 %v203
    %1220 = vmatprep.subr.mxu0 0.0
    %1221 = vmatpush1.msra.mxu0 %v205
    %1222 = vmatprep.subr.mxu0 0.0
    %1223 = vmatpush1.msra.mxu0 %v207
    %1224 = vmatprep.subr.mxu0 0.0
    %1225 = vmatpush1.msra.mxu0 0.0
    %1226 = vmatprep.subr.mxu0 0.0
    %1227 = vmatpush1.msra.mxu0 0.0
    %1228 = vmatprep.subr.mxu0 0.0
    %1229 = vmatpush1.msra.mxu0 0.0
    %1230 = vmatprep.subr.mxu0 0.0
    %1231 = vmatpush1.msra.mxu0 0.0
    %1232 = vmatprep.subr.mxu0 0.0
    %1233 = vmatpush1.msra.mxu0 0.0
    %1234 = vmatprep.subr.mxu0 0.0
    %1235 = vmatpush1.msra.mxu0 0.0
    %1236 = vmatprep.subr.mxu0 0.0
    %1237 = vmatpush1.msra.mxu0 0.0
    %1238 = vmatprep.subr.mxu0 0.0
    %1239 = vmatpush1.msra.mxu0 0.0
    %1240 = vmatprep.subr.mxu0 0.0
    %1241 = vmatpush1.msra.mxu0 0.0
    %1242 = vmatprep.subr.mxu0 0.0
    %1243 = vmatpush1.msra.mxu0 0.0
    %1244 = vmatprep.subr.mxu0 0.0
    %1245 = vmatpush1.msra.mxu0 0.0
    %1246 = vmatprep.subr.mxu0 0.0
    %1247 = vmatpush1.msra.mxu0 0.0
    %1248 = vmatprep.subr.mxu0 0.0
    %1249 = vmatpush1.msra.mxu0 0.0
    %1250 = vmatprep.subr.mxu0 0.0
    %1251 = vmatpush1.msra.mxu0 0.0
    %1252 = vmatprep.subr.mxu0 0.0
    %1253 = vmatpush1.msra.mxu0 0.0
    %1254 = vmatprep.subr.mxu0 0.0
    %1255 = vmatpush1.msra.mxu0 0.0
    %1256 = vmatprep.subr.mxu0 0.0
    %1257 = vmatpush1.msra.mxu0 0.0
    %1258 = vmatprep.subr.mxu0 0.0
    %1259 = vmatpush1.msra.mxu0 0.0
    %1260 = vmatprep.subr.mxu0 0.0
    %1261 = vmatpush1.msra.mxu0 0.0
    %1262 = vmatprep.subr.mxu0 0.0
    %1263 = vmatpush1.msra.mxu0 0.0
    %1264 = vmatprep.subr.mxu0 0.0
    %1265 = vmatpush1.msra.mxu0 0.0
    %1266 = vmatprep.subr.mxu0 0.0
    %1267 = vmatpush1.msra.mxu0 0.0
    %1268 = vmatprep.subr.mxu0 0.0
    %1269 = vmatpush1.msra.mxu0 0.0
    %1270 = vmatprep.subr.mxu0 0.0
    %1271 = vmatpush1.msra.mxu0 0.0
    %1272 = vmatprep.mubr.f32.mxu0 0.0
    %1273 = vmatmul.mubr.f32.gmra.mrb[0].mxu0 %v1206
    %v1274 = vpop.f32.mrb[0].mxu0
    %v1275 = vadd.f32 %v213, %v1274
    %v1276 = vpop.f32.mrb[0].mxu0
    %1277 = vdwg.mxu0
    %v1278 = vxor.u32 %v1275, 2147483648
    %v1279 = vmul.f32 %v1278, 1.442695
    %v1280 = vpow.pop %v1279
    %v1281 = vadd.f32 %v1280, 1.0
    %v1282 = vrcp.pop %v1281
    %v1283 = vmul.f32 1.0, %v1282
    %v1284 = vtanh.pop %v1275
    %v1285 = vmul.f32 %v1283, %v1185
    %1287 = vrot.lane.b32.xlu0 %v1284, 64
    %v1288 = vpop.permute.xlu0 %1287
    %v1290 = vmul.f32 %v1283, %v1288
    %1292 = vrot.lane.b32.xlu0 %v1290, 32
    %v1293 = vpop.permute.xlu0 %1292
    %v1295 = vadd.f32 %v1285, %v1293
    %v1296 = vtanh.pop %v1295
    %1298 = vrot.lane.b32.xlu0 %v1296, 64
    %v1299 = vpop.permute.xlu0 %1298
    %v1301 = vmul.f32 %v1283, %v1299
    %1303 = vrot.lane.b32.xlu0 %v1301, 32
    %v1304 = vpop.permute.xlu0 %1303
    %1306 = vst.msk [vmem:[#allocation2 + $0x38] sm:$0xff] %vm243, %v1304
    %v1307 = vld [vmem:[#allocation2] sm:$0xff]
    %v1308 = vld [vmem:[#allocation2 + $0x8] sm:$0xff]
    %v1309 = vld [vmem:[#allocation2 + $0x10] sm:$0xff]
    %v1310 = vld [vmem:[#allocation2 + $0x18] sm:$0xff]
    %v1311 = vld [vmem:[#allocation2 + $0x20] sm:$0xff]
    %v1312 = vld [vmem:[#allocation2 + $0x28] sm:$0xff]
    %v1313 = vld [vmem:[#allocation2 + $0x30] sm:$0xff]
    %v1314 = vld [vmem:[#allocation2 + $0x38] sm:$0xff]
    %v1315 = vld [vmem:[%s5] sm:$0x1]
    %v1317 = vlaneseq
    %v1318 = vshrl.u32 %v1317, 7
    %v1319 = vsub.s32 0, %v1318
    %v1320 = vrot.slane %v1315, %v1319
    %v1322 = vmul.f32 %v1307, %v1320
    %v1323 = vmul.f32 %v1308, %v1320
    %v1324 = vmul.f32 %v1309, %v1320
    %v1325 = vmul.f32 %v1310, %v1320
    %v1326 = vmul.f32 %v1311, %v1320
    %v1327 = vmul.f32 %v1312, %v1320
    %v1328 = vmul.f32 %v1313, %v1320
    %v1329 = vmul.f32 %v1314, %v1320
    %v1330 = vsel %vm243, %v1322, 0.0
    %1331 = vadd.xlane.f32.xlu0 %v1330
    %v1332 = vpop.xlane.xlu0 %1331
    %v1333 = vsel %vm243, %v1323, 0.0
    %1334 = vadd.xlane.f32.xlu0 %v1333
    %v1335 = vpop.xlane.xlu0 %1334
    %v1336 = vsel %vm243, %v1324, 0.0
    %1337 = vadd.xlane.f32.xlu0 %v1336
    %v1338 = vpop.xlane.xlu0 %1337
    %v1339 = vsel %vm243, %v1325, 0.0
    %1340 = vadd.xlane.f32.xlu0 %v1339
    %v1341 = vpop.xlane.xlu0 %1340
    %v1342 = vsel %vm243, %v1326, 0.0
    %1343 = vadd.xlane.f32.xlu0 %v1342
    %v1344 = vpop.xlane.xlu0 %1343
    %v1345 = vsel %vm243, %v1327, 0.0
    %1346 = vadd.xlane.f32.xlu0 %v1345
    %v1347 = vpop.xlane.xlu0 %1346
    %v1348 = vsel %vm243, %v1328, 0.0
    %1349 = vadd.xlane.f32.xlu0 %v1348
    %v1350 = vpop.xlane.xlu0 %1349
    %v1351 = vsel %vm243, %v1329, 0.0
    %1352 = vadd.xlane.f32.xlu0 %v1351
    %v1353 = vpop.xlane.xlu0 %1352
    %v1354 = vld [vmem:[#allocation3] sm:$0x1]
    %v1356 = vlaneseq
    %v1357 = vshrl.u32 %v1356, 7
    %v1358 = vsub.s32 0, %v1357
    %v1359 = vrot.slane %v1354, %v1358
    %v1361 = vadd.f32 %v1332, %v1359
    %v1362 = vadd.f32 %v1335, %v1359
    %v1363 = vadd.f32 %v1338, %v1359
    %v1364 = vadd.f32 %v1341, %v1359
    %v1365 = vadd.f32 %v1344, %v1359
    %v1366 = vadd.f32 %v1347, %v1359
    %v1367 = vadd.f32 %v1350, %v1359
    %v1368 = vadd.f32 %v1353, %v1359
    %vm1369 = vcmask 7168
    %1370 = vst.msk [vmem:[%s7] sm:$0xff] %vm1369, %v1361
    %1371 = vst.msk [vmem:[%s7 + $0x8] sm:$0xff] %vm1369, %v1362
    %1372 = vst.msk [vmem:[%s7 + $0x10] sm:$0xff] %vm1369, %v1363
    %1373 = vst.msk [vmem:[%s7 + $0x18] sm:$0xff] %vm1369, %v1364
    %1374 = vst.msk [vmem:[%s7 + $0x20] sm:$0xff] %vm1369, %v1365
    %1375 = vst.msk [vmem:[%s7 + $0x28] sm:$0xff] %vm1369, %v1366
    %1376 = vst.msk [vmem:[%s7 + $0x30] sm:$0xff] %vm1369, %v1367
    %1377 = vst.msk [vmem:[%s7 + $0x38] sm:$0xff] %vm1369, %v1368
    // Predicated region
    $region34: #{tpu_custom_call.1} parent=1 // pred_check
      _
    $region35: #{tpu_custom_call.1} parent=1 // pred_check_branch
      %1379 = sbr.rel (0) target = $region37
    $region36: #{tpu_custom_call.1} parent=1 // pred_region
      _
    $region37: #{tpu_custom_call.1} parent=1 // pred_fallthru
      _
    // Predicated region
    $region38: #{tpu_custom_call.1} parent=1 // pred_check
      _
    $region39: #{tpu_custom_call.1} parent=1 // pred_check_branch
      %1381 = sbr.rel (0) target = $region41
    $region40: #{tpu_custom_call.1} parent=1 // pred_region
      _
    $region41: #{tpu_custom_call.1} parent=1 // pred_fallthru
      _
    %1382 = vsyncpa [#allocation5], 1

</llo_original>
